<compile_context>
chip_gen: v5e
topology: v5e:2x2
jax: 0.10.0
libtpu: 0.0.40
codegen_flags: <defaults>
</compile_context>

<pallas_src>
import math
import functools

import jax
import jax.numpy as jnp
from jax.experimental import pallas as pl
from jax.experimental.pallas import tpu as pltpu


CONFIG = dict(
    vocab_size=100,
    hidden=32,
    num_layers=2,
    num_heads=4,
    intermediate=64,
    max_pos=40,
    type_vocab=2,
    pad_token_id=1,
    polarities_dim=3,
    layer_norm_eps=1e-5,
)


# ----------------------------------------------------------------------------
# In-kernel helpers (f32 statistics, exact erf-GELU to match torch defaults)
# ----------------------------------------------------------------------------

def _ln(x, gamma, beta, eps):
    mean = jnp.mean(x, axis=-1, keepdims=True)
    cen = x - mean
    var = jnp.mean(cen * cen, axis=-1, keepdims=True)
    inv = jax.lax.rsqrt(var + eps)
    return (cen * inv) * gamma + beta


def _gelu_exact(x):
    return 0.5 * x * (1.0 + jax.lax.erf(x * (1.0 / math.sqrt(2.0))))


# ----------------------------------------------------------------------------
# Fully fused model kernel: emb-LN -> L encoder layers -> pooler -> classifier
# One grid step per batch element; weights resident in VMEM across the grid.
# ----------------------------------------------------------------------------

def _roberta_kernel(nH, dH, L, scale, eps,
                    emb_ref, mask_ref,
                    eg_ref, eb_ref,
                    wqkv_ref, bqkv_ref,
                    wo_ref, bo_ref,
                    g1_ref, b1_ref,
                    w1_ref, bi1_ref,
                    w2_ref, bi2_ref,
                    g2_ref, b2_ref,
                    wp_ref, bp_ref,
                    wf_ref, bf_ref,
                    o_ref,
                    ctx_ref):
    H = nH * dH

    # Embedding LayerNorm (per-row, so per-batch tiling is exact).
    x = _ln(emb_ref[0], eg_ref[...], eb_ref[...], eps)          # (S, H) f32
    m = mask_ref[0]                                             # (1, S) additive mask

    # Encoder layers: trace-time loop over stacked weights (static leading-dim index).
    for l in range(L):
        xb = x.astype(jnp.bfloat16)

        # Fused QKV projection: bf16 MXU, f32 accumulate, lane-dense (S, 3H) output.
        qkv = jnp.dot(xb, wqkv_ref[l], preferred_element_type=jnp.float32) + bqkv_ref[l]
        q = qkv[:, 0 * H:1 * H]
        k = qkv[:, 1 * H:2 * H]
        v = qkv[:, 2 * H:3 * H]

        # Multi-head scaled-dot-product attention; heads unrolled at trace time.
        for h in range(nH):
            qh = q[:, h * dH:(h + 1) * dH].astype(jnp.bfloat16)
            kh = k[:, h * dH:(h + 1) * dH].astype(jnp.bfloat16)
            vh = v[:, h * dH:(h + 1) * dH].astype(jnp.bfloat16)
            s = jnp.einsum("qd,kd->qk", qh, kh,
                           preferred_element_type=jnp.float32) * scale   # (S, S) f32
            s = s + m
            s = s - jnp.max(s, axis=-1, keepdims=True)
            p = jnp.exp(s)
            p = p * pl.reciprocal(jnp.sum(p, axis=-1, keepdims=True), approx=True)
            ctx_ref[:, h * dH:(h + 1) * dH] = jnp.dot(
                p.astype(jnp.bfloat16), vh, preferred_element_type=jnp.float32)

        ctx = ctx_ref[...]                                      # (S, H) f32

        # Attention output projection + residual + LN1 (f32 stats).
        attn = jnp.dot(ctx.astype(jnp.bfloat16), wo_ref[l],
                       preferred_element_type=jnp.float32) + bo_ref[l]
        h1 = _ln(attn + x, g1_ref[l], b1_ref[l], eps)

        # FFN: GELU(h1 @ W1 + b1) @ W2 + b2, + residual + LN2.
        inter = jnp.dot(h1.astype(jnp.bfloat16), w1_ref[l],
                        preferred_element_type=jnp.float32) + bi1_ref[l]
        inter = _gelu_exact(inter)
        ffn = jnp.dot(inter.astype(jnp.bfloat16), w2_ref[l],
                      preferred_element_type=jnp.float32) + bi2_ref[l]
        x = _ln(ffn + h1, g2_ref[l], b2_ref[l], eps)

    # Pooler: tanh(W_p @ hidden[:, 0] + b_p) -> dropout(identity, eval) -> final Linear.
    cls = x[0:1, :].astype(jnp.bfloat16)                        # (1, H) CLS token
    pooled = jnp.tanh(jnp.dot(cls, wp_ref[...],
                              preferred_element_type=jnp.float32) + bp_ref[...])
    logits = jnp.dot(pooled.astype(jnp.bfloat16), wf_ref[...],
                     preferred_element_type=jnp.float32) + bf_ref[...]   # (1, P)
    o_ref[...] = logits[None]                                   # (1, 1, P)


def roberta_pallas(emb, add_mask, params, *, B, S, H, I, L, nH, P, eps):
    dH = H // nH
    scale = 1.0 / math.sqrt(dH)

    def full(shape):
        # Weight/bias block = full array; constant block index -> resident across grid.
        return pl.BlockSpec(shape, lambda b: (0,) * len(shape))

    out3 = pl.pallas_call(
        functools.partial(_roberta_kernel, nH, dH, L, scale, eps),
        out_shape=jax.ShapeDtypeStruct((B, 1, P), jnp.float32),
        grid=(B,),
        in_specs=[
            pl.BlockSpec((1, S, H), lambda b: (b, 0, 0)),   # summed embeddings of batch b
            pl.BlockSpec((1, 1, S), lambda b: (b, 0, 0)),   # additive attention mask
            full((1, H)), full((1, H)),                     # embedding LayerNorm
            full((L, H, 3 * H)), full((L, 1, 3 * H)),       # fused QKV (stacked over layers)
            full((L, H, H)), full((L, 1, H)),               # attention output proj
            full((L, 1, H)), full((L, 1, H)),               # LN1
            full((L, H, I)), full((L, 1, I)),               # fc1
            full((L, I, H)), full((L, 1, H)),               # fc2
            full((L, 1, H)), full((L, 1, H)),               # LN2
            full((H, H)), full((1, H)),                     # pooler
            full((H, P)), full((1, P)),                     # final classifier
        ],
        out_specs=pl.BlockSpec((1, 1, P), lambda b: (b, 0, 0)),
        scratch_shapes=[pltpu.VMEM((S, H), jnp.float32)],   # per-head attention context
        compiler_params=pltpu.CompilerParams(
            dimension_semantics=("parallel",),
            vmem_limit_bytes=32 * 1024 * 1024),
    )(emb, add_mask,
      params["emb_ln_g"], params["emb_ln_b"],
      params["qkv_w"], params["qkv_b"],
      params["o_w"], params["o_b"],
      params["ln1_g"], params["ln1_b"],
      params["fc1_w"], params["fc1_b"],
      params["fc2_w"], params["fc2_b"],
      params["ln2_g"], params["ln2_b"],
      params["pool_w"], params["pool_b"],
      params["final_w"], params["final_b"])
    return out3.reshape(B, P)


# ----------------------------------------------------------------------------
# Parameters & forward
# ----------------------------------------------------------------------------

def init_params(key, cfg):
    keys = iter(jax.random.split(key, 256))

    def nrm(shape):
        return jax.random.normal(next(keys), shape, jnp.float32) * 0.02

    H, I, L = cfg["hidden"], cfg["intermediate"], cfg["num_layers"]

    # Per-layer weights stacked with a leading layer axis so the whole encoder
    # fits in one pallas_call; QKV fused on the host into a single (H, 3H) weight.
    qkv_w, o_w, fc1_w, fc2_w = [], [], [], []
    for _ in range(L):
        qw, kw, vw = nrm((H, H)), nrm((H, H)), nrm((H, H))
        qkv_w.append(jnp.concatenate([qw, kw, vw], axis=1))
        o_w.append(nrm((H, H)))
        fc1_w.append(nrm((H, I)))
        fc2_w.append(nrm((I, H)))

    p = {
        "word_emb": nrm((cfg["vocab_size"], H)),
        "pos_emb": nrm((cfg["max_pos"], H)),
        "type_emb": nrm((cfg["type_vocab"], H)),
        "emb_ln_g": jnp.ones((1, H), jnp.float32),
        "emb_ln_b": jnp.zeros((1, H), jnp.float32),

        "qkv_w": jnp.stack(qkv_w).astype(jnp.bfloat16),        # (L, H, 3H)
        "qkv_b": jnp.zeros((L, 1, 3 * H), jnp.float32),
        "o_w": jnp.stack(o_w).astype(jnp.bfloat16),            # (L, H, H)
        "o_b": jnp.zeros((L, 1, H), jnp.float32),
        "ln1_g": jnp.ones((L, 1, H), jnp.float32),
        "ln1_b": jnp.zeros((L, 1, H), jnp.float32),
        "fc1_w": jnp.stack(fc1_w).astype(jnp.bfloat16),        # (L, H, I)
        "fc1_b": jnp.zeros((L, 1, I), jnp.float32),
        "fc2_w": jnp.stack(fc2_w).astype(jnp.bfloat16),        # (L, I, H)
        "fc2_b": jnp.zeros((L, 1, H), jnp.float32),
        "ln2_g": jnp.ones((L, 1, H), jnp.float32),
        "ln2_b": jnp.zeros((L, 1, H), jnp.float32),

        "pool_w": nrm((H, H)).astype(jnp.bfloat16),
        "pool_b": jnp.zeros((1, H), jnp.float32),
        "final_w": nrm((H, cfg["polarities_dim"])).astype(jnp.bfloat16),
        "final_b": jnp.zeros((1, cfg["polarities_dim"]), jnp.float32),
    }
    return p


def roberta_classifier_forward(params, input_ids, token_type_ids, attention_mask, cfg):
    B, S = input_ids.shape
    H = cfg["hidden"]
    nH = cfg["num_heads"]
    I = cfg["intermediate"]
    L = cfg["num_layers"]
    P = cfg["polarities_dim"]
    eps = cfg["layer_norm_eps"]
    pad = cfg["pad_token_id"]

    # --- embeddings: gathers + RoBERTa cumsum position ids kept in XLA ---
    # TODO(synk): embedding lookups / cumsum position ids have no clean tiny-Pallas
    # gather equivalent and are done in plain XLA.
    not_pad = (input_ids != pad).astype(jnp.int32)
    position_ids = jnp.cumsum(not_pad, axis=1) * not_pad + pad
    emb = (params["word_emb"][input_ids]
           + params["pos_emb"][position_ids]
           + params["type_emb"][token_type_ids])                 # (B, S, H) f32

    # Additive attention mask, broadcast inside the kernel; finite -1e9 (not finfo.min).
    add_mask = ((1.0 - attention_mask.astype(jnp.float32)) * (-1e9)).reshape(B, 1, S)

    # Everything else (emb LN, encoder stack, pooler, dropout-identity, classifier)
    # runs inside one fused Pallas kernel.
    return roberta_pallas(emb, add_mask, params,
                          B=B, S=S, H=H, I=I, L=L, nH=nH, P=P, eps=eps)


# ----------------------------------------------------------------------------
# Driver
# ----------------------------------------------------------------------------

if __name__ == "__main__":
    cfg = CONFIG
    B, S = 2, 8

    key = jax.random.PRNGKey(0)
    k_param, k_ids = jax.random.split(key)

    params = init_params(k_param, cfg)

    input_ids = jax.random.randint(k_ids, (B, S), 2, cfg["vocab_size"], dtype=jnp.int32)
    token_type_ids = jnp.zeros((B, S), dtype=jnp.int32)
    attention_mask = jnp.ones((B, S), dtype=jnp.int32)

    fwd = jax.jit(functools.partial(roberta_classifier_forward, cfg=cfg))
    logits = fwd(params, input_ids, token_type_ids, attention_mask)
    jax.block_until_ready(logits)

    assert logits.shape == (B, cfg["polarities_dim"])
    assert logits.dtype == jnp.float32
    print("KERNEL_OK")
</pallas_src>

<mosaic_0001>
module attributes {stable_mosaic.version = 11 : i64} {
  func.func @_roberta_kernel(%arg0: i32, %arg1: memref<1x8x32xf32, #tpu.memory_space<vmem>>, %arg2: memref<1x1x8xf32, #tpu.memory_space<vmem>>, %arg3: memref<1x32xf32, #tpu.memory_space<vmem>>, %arg4: memref<1x32xf32, #tpu.memory_space<vmem>>, %arg5: memref<2x32x96xbf16, #tpu.memory_space<vmem>>, %arg6: memref<2x1x96xf32, #tpu.memory_space<vmem>>, %arg7: memref<2x32x32xbf16, #tpu.memory_space<vmem>>, %arg8: memref<2x1x32xf32, #tpu.memory_space<vmem>>, %arg9: memref<2x1x32xf32, #tpu.memory_space<vmem>>, %arg10: memref<2x1x32xf32, #tpu.memory_space<vmem>>, %arg11: memref<2x32x64xbf16, #tpu.memory_space<vmem>>, %arg12: memref<2x1x64xf32, #tpu.memory_space<vmem>>, %arg13: memref<2x64x32xbf16, #tpu.memory_space<vmem>>, %arg14: memref<2x1x32xf32, #tpu.memory_space<vmem>>, %arg15: memref<2x1x32xf32, #tpu.memory_space<vmem>>, %arg16: memref<2x1x32xf32, #tpu.memory_space<vmem>>, %arg17: memref<32x32xbf16, #tpu.memory_space<vmem>>, %arg18: memref<1x32xf32, #tpu.memory_space<vmem>>, %arg19: memref<32x3xbf16, #tpu.memory_space<vmem>>, %arg20: memref<1x3xf32, #tpu.memory_space<vmem>>, %arg21: memref<1x1x3xf32, #tpu.memory_space<vmem>>, %arg22: memref<8x32xf32, #tpu.memory_space<vmem>>) attributes {dimension_semantics = [#tpu.dimension_semantics<parallel>], iteration_bounds = array<i64: 2>, scalar_prefetch = 0 : i64, scratch_operands = 1 : i64, tpu.core_type = #tpu.core_type<tc>, window_params = [{transform_indices = @transform_0, window_bounds = array<i64: 1, 8, 32>}, {transform_indices = @transform_1, window_bounds = array<i64: 1, 1, 8>}, {pipeline_mode = #tpu.pipeline_mode<synchronous>, transform_indices = @transform_2, window_bounds = array<i64: 1, 32>}, {pipeline_mode = #tpu.pipeline_mode<synchronous>, transform_indices = @transform_3, window_bounds = array<i64: 1, 32>}, {pipeline_mode = #tpu.pipeline_mode<synchronous>, transform_indices = @transform_4, window_bounds = array<i64: 2, 32, 96>}, {pipeline_mode = #tpu.pipeline_mode<synchronous>, transform_indices = @transform_5, window_bounds = array<i64: 2, 1, 96>}, {pipeline_mode = #tpu.pipeline_mode<synchronous>, transform_indices = @transform_6, window_bounds = array<i64: 2, 32, 32>}, {pipeline_mode = #tpu.pipeline_mode<synchronous>, transform_indices = @transform_7, window_bounds = array<i64: 2, 1, 32>}, {pipeline_mode = #tpu.pipeline_mode<synchronous>, transform_indices = @transform_8, window_bounds = array<i64: 2, 1, 32>}, {pipeline_mode = #tpu.pipeline_mode<synchronous>, transform_indices = @transform_9, window_bounds = array<i64: 2, 1, 32>}, {pipeline_mode = #tpu.pipeline_mode<synchronous>, transform_indices = @transform_10, window_bounds = array<i64: 2, 32, 64>}, {pipeline_mode = #tpu.pipeline_mode<synchronous>, transform_indices = @transform_11, window_bounds = array<i64: 2, 1, 64>}, {pipeline_mode = #tpu.pipeline_mode<synchronous>, transform_indices = @transform_12, window_bounds = array<i64: 2, 64, 32>}, {pipeline_mode = #tpu.pipeline_mode<synchronous>, transform_indices = @transform_13, window_bounds = array<i64: 2, 1, 32>}, {pipeline_mode = #tpu.pipeline_mode<synchronous>, transform_indices = @transform_14, window_bounds = array<i64: 2, 1, 32>}, {pipeline_mode = #tpu.pipeline_mode<synchronous>, transform_indices = @transform_15, window_bounds = array<i64: 2, 1, 32>}, {pipeline_mode = #tpu.pipeline_mode<synchronous>, transform_indices = @transform_16, window_bounds = array<i64: 32, 32>}, {pipeline_mode = #tpu.pipeline_mode<synchronous>, transform_indices = @transform_17, window_bounds = array<i64: 1, 32>}, {pipeline_mode = #tpu.pipeline_mode<synchronous>, transform_indices = @transform_18, window_bounds = array<i64: 32, 3>}, {pipeline_mode = #tpu.pipeline_mode<synchronous>, transform_indices = @transform_19, window_bounds = array<i64: 1, 3>}, {transform_indices = @transform_20, window_bounds = array<i64: 1, 1, 3>}]} {
    %c0 = arith.constant 0 : index
    %c0_0 = arith.constant 0 : index
    %c0_1 = arith.constant 0 : index
    %0 = vector.load %arg1[%c0, %c0_0, %c0_1] : memref<1x8x32xf32, #tpu.memory_space<vmem>>, vector<1x8x32xf32>
    %1 = vector.shape_cast %0 : vector<1x8x32xf32> to vector<8x32xf32>
    %c0_2 = arith.constant 0 : index
    %c0_3 = arith.constant 0 : index
    %2 = vector.load %arg3[%c0_2, %c0_3] : memref<1x32xf32, #tpu.memory_space<vmem>>, vector<1x32xf32>
    %c0_4 = arith.constant 0 : index
    %c0_5 = arith.constant 0 : index
    %3 = vector.load %arg4[%c0_4, %c0_5] : memref<1x32xf32, #tpu.memory_space<vmem>>, vector<1x32xf32>
    %cst = arith.constant dense<0.000000e+00> : vector<8xf32>
    %4 = vector.multi_reduction <add>, %1, %cst [1] : vector<8x32xf32> to vector<8xf32>
    %5 = vector.shape_cast %4 : vector<8xf32> to vector<8x1xf32>
    %cst_6 = arith.constant 3.200000e+01 : f32
    %6 = vector.broadcast %cst_6 : f32 to vector<8x1xf32>
    %7 = arith.divf %5, %6 : vector<8x1xf32>
    %8 = vector.broadcast %7 : vector<8x1xf32> to vector<8x32xf32>
    %9 = arith.subf %1, %8 : vector<8x32xf32>
    %10 = arith.mulf %9, %9 : vector<8x32xf32>
    %cst_7 = arith.constant dense<0.000000e+00> : vector<8xf32>
    %11 = vector.multi_reduction <add>, %10, %cst_7 [1] : vector<8x32xf32> to vector<8xf32>
    %12 = vector.shape_cast %11 : vector<8xf32> to vector<8x1xf32>
    %cst_8 = arith.constant 3.200000e+01 : f32
    %13 = vector.broadcast %cst_8 : f32 to vector<8x1xf32>
    %14 = arith.divf %12, %13 : vector<8x1xf32>
    %cst_9 = arith.constant 9.99999974E-6 : f32
    %15 = vector.broadcast %cst_9 : f32 to vector<8x1xf32>
    %16 = arith.addf %14, %15 : vector<8x1xf32>
    %17 = math.rsqrt %16 : vector<8x1xf32>
    %18 = vector.broadcast %17 : vector<8x1xf32> to vector<8x32xf32>
    %19 = arith.mulf %9, %18 : vector<8x32xf32>
    %20 = vector.broadcast %2 : vector<1x32xf32> to vector<8x32xf32>
    %21 = arith.mulf %19, %20 : vector<8x32xf32>
    %22 = vector.broadcast %3 : vector<1x32xf32> to vector<8x32xf32>
    %23 = arith.addf %21, %22 : vector<8x32xf32>
    %c0_10 = arith.constant 0 : index
    %c0_11 = arith.constant 0 : index
    %c0_12 = arith.constant 0 : index
    %24 = vector.load %arg2[%c0_10, %c0_11, %c0_12] : memref<1x1x8xf32, #tpu.memory_space<vmem>>, vector<1x1x8xf32>
    %25 = vector.shape_cast %24 : vector<1x1x8xf32> to vector<1x8xf32>
    %26 = arith.truncf %23 : vector<8x32xf32> to vector<8x32xbf16>
    %c0_13 = arith.constant 0 : index
    %c0_14 = arith.constant 0 : index
    %c0_15 = arith.constant 0 : index
    %27 = vector.load %arg5[%c0_13, %c0_14, %c0_15] : memref<2x32x96xbf16, #tpu.memory_space<vmem>>, vector<1x32x96xbf16>
    %28 = vector.shape_cast %27 : vector<1x32x96xbf16> to vector<32x96xbf16>
    %cst_16 = arith.constant dense<0.000000e+00> : vector<8x96xf32>
    %29 = tpu.matmul %26, %28, %cst_16 {dimension_numbers = #tpu.dot_dimension_numbers<[1], [0], [0], [1], [0, 0, 1, 1], [], []>} : vector<8x32xbf16>, vector<32x96xbf16>, vector<8x96xf32> -> vector<8x96xf32>
    %c0_17 = arith.constant 0 : index
    %c0_18 = arith.constant 0 : index
    %c0_19 = arith.constant 0 : index
    %30 = vector.load %arg6[%c0_17, %c0_18, %c0_19] : memref<2x1x96xf32, #tpu.memory_space<vmem>>, vector<1x1x96xf32>
    %31 = vector.shape_cast %30 : vector<1x1x96xf32> to vector<1x96xf32>
    %32 = vector.broadcast %31 : vector<1x96xf32> to vector<8x96xf32>
    %33 = arith.addf %29, %32 : vector<8x96xf32>
    %34 = vector.extract_strided_slice %33 {offsets = [0, 0], sizes = [8, 32], strides = [1, 1]} : vector<8x96xf32> to vector<8x32xf32>
    %35 = vector.extract_strided_slice %33 {offsets = [0, 32], sizes = [8, 32], strides = [1, 1]} : vector<8x96xf32> to vector<8x32xf32>
    %36 = vector.extract_strided_slice %33 {offsets = [0, 64], sizes = [8, 32], strides = [1, 1]} : vector<8x96xf32> to vector<8x32xf32>
    %37 = vector.extract_strided_slice %34 {offsets = [0, 0], sizes = [8, 8], strides = [1, 1]} : vector<8x32xf32> to vector<8x8xf32>
    %38 = arith.truncf %37 : vector<8x8xf32> to vector<8x8xbf16>
    %39 = vector.extract_strided_slice %35 {offsets = [0, 0], sizes = [8, 8], strides = [1, 1]} : vector<8x32xf32> to vector<8x8xf32>
    %40 = arith.truncf %39 : vector<8x8xf32> to vector<8x8xbf16>
    %41 = vector.extract_strided_slice %36 {offsets = [0, 0], sizes = [8, 8], strides = [1, 1]} : vector<8x32xf32> to vector<8x8xf32>
    %42 = arith.truncf %41 : vector<8x8xf32> to vector<8x8xbf16>
    "tpu.trace_start"() <{level = 10 : i32, message = "qd,kd->qk"}> : () -> ()
    %cst_20 = arith.constant dense<0.000000e+00> : vector<8x8xf32>
    %43 = tpu.matmul %38, %40, %cst_20 {dimension_numbers = #tpu.dot_dimension_numbers<[1], [1], [0], [0], [0, 0, 1, 0], [], []>} : vector<8x8xbf16>, vector<8x8xbf16>, vector<8x8xf32> -> vector<8x8xf32>
    "tpu.trace_stop"() : () -> ()
    %cst_21 = arith.constant 0.353553385 : f32
    %44 = vector.broadcast %cst_21 : f32 to vector<8x8xf32>
    %45 = arith.mulf %43, %44 : vector<8x8xf32>
    %46 = vector.broadcast %25 : vector<1x8xf32> to vector<8x8xf32>
    %47 = arith.addf %45, %46 : vector<8x8xf32>
    %cst_22 = arith.constant dense<0xFF800000> : vector<8xf32>
    %48 = vector.multi_reduction <maximumf>, %47, %cst_22 [1] : vector<8x8xf32> to vector<8xf32>
    %49 = vector.shape_cast %48 : vector<8xf32> to vector<8x1xf32>
    %50 = vector.broadcast %49 : vector<8x1xf32> to vector<8x8xf32>
    %51 = arith.subf %47, %50 : vector<8x8xf32>
    %52 = math.exp %51 : vector<8x8xf32>
    %cst_23 = arith.constant dense<0.000000e+00> : vector<8xf32>
    %53 = vector.multi_reduction <add>, %52, %cst_23 [1] : vector<8x8xf32> to vector<8xf32>
    %54 = vector.shape_cast %53 : vector<8xf32> to vector<8x1xf32>
    %55 = tpu.reciprocal %54 {approx = true} : vector<8x1xf32> -> vector<8x1xf32>
    %56 = vector.broadcast %55 : vector<8x1xf32> to vector<8x8xf32>
    %57 = arith.mulf %52, %56 : vector<8x8xf32>
    %58 = arith.truncf %57 : vector<8x8xf32> to vector<8x8xbf16>
    %cst_24 = arith.constant dense<0.000000e+00> : vector<8x8xf32>
    %59 = tpu.matmul %58, %42, %cst_24 {dimension_numbers = #tpu.dot_dimension_numbers<[1], [0], [0], [1], [0, 0, 1, 1], [], []>} : vector<8x8xbf16>, vector<8x8xbf16>, vector<8x8xf32> -> vector<8x8xf32>
    %c0_25 = arith.constant 0 : index
    %c0_26 = arith.constant 0 : index
    %60 = vector.load %arg22[%c0_25, %c0_26] : memref<8x32xf32, #tpu.memory_space<vmem>>, vector<8x8xf32>
    tpu.vector_store %arg22[%c0_25, %c0_26], %59 {strides = array<i32>} : memref<8x32xf32, #tpu.memory_space<vmem>>, vector<8x8xf32>,
    %61 = vector.extract_strided_slice %34 {offsets = [0, 8], sizes = [8, 8], strides = [1, 1]} : vector<8x32xf32> to vector<8x8xf32>
    %62 = arith.truncf %61 : vector<8x8xf32> to vector<8x8xbf16>
    %63 = vector.extract_strided_slice %35 {offsets = [0, 8], sizes = [8, 8], strides = [1, 1]} : vector<8x32xf32> to vector<8x8xf32>
    %64 = arith.truncf %63 : vector<8x8xf32> to vector<8x8xbf16>
    %65 = vector.extract_strided_slice %36 {offsets = [0, 8], sizes = [8, 8], strides = [1, 1]} : vector<8x32xf32> to vector<8x8xf32>
    %66 = arith.truncf %65 : vector<8x8xf32> to vector<8x8xbf16>
    "tpu.trace_start"() <{level = 10 : i32, message = "qd,kd->qk"}> : () -> ()
    %cst_27 = arith.constant dense<0.000000e+00> : vector<8x8xf32>
    %67 = tpu.matmul %62, %64, %cst_27 {dimension_numbers = #tpu.dot_dimension_numbers<[1], [1], [0], [0], [0, 0, 1, 0], [], []>} : vector<8x8xbf16>, vector<8x8xbf16>, vector<8x8xf32> -> vector<8x8xf32>
    "tpu.trace_stop"() : () -> ()
    %cst_28 = arith.constant 0.353553385 : f32
    %68 = vector.broadcast %cst_28 : f32 to vector<8x8xf32>
    %69 = arith.mulf %67, %68 : vector<8x8xf32>
    %70 = vector.broadcast %25 : vector<1x8xf32> to vector<8x8xf32>
    %71 = arith.addf %69, %70 : vector<8x8xf32>
    %cst_29 = arith.constant dense<0xFF800000> : vector<8xf32>
    %72 = vector.multi_reduction <maximumf>, %71, %cst_29 [1] : vector<8x8xf32> to vector<8xf32>
    %73 = vector.shape_cast %72 : vector<8xf32> to vector<8x1xf32>
    %74 = vector.broadcast %73 : vector<8x1xf32> to vector<8x8xf32>
    %75 = arith.subf %71, %74 : vector<8x8xf32>
    %76 = math.exp %75 : vector<8x8xf32>
    %cst_30 = arith.constant dense<0.000000e+00> : vector<8xf32>
    %77 = vector.multi_reduction <add>, %76, %cst_30 [1] : vector<8x8xf32> to vector<8xf32>
    %78 = vector.shape_cast %77 : vector<8xf32> to vector<8x1xf32>
    %79 = tpu.reciprocal %78 {approx = true} : vector<8x1xf32> -> vector<8x1xf32>
    %80 = vector.broadcast %79 : vector<8x1xf32> to vector<8x8xf32>
    %81 = arith.mulf %76, %80 : vector<8x8xf32>
    %82 = arith.truncf %81 : vector<8x8xf32> to vector<8x8xbf16>
    %cst_31 = arith.constant dense<0.000000e+00> : vector<8x8xf32>
    %83 = tpu.matmul %82, %66, %cst_31 {dimension_numbers = #tpu.dot_dimension_numbers<[1], [0], [0], [1], [0, 0, 1, 1], [], []>} : vector<8x8xbf16>, vector<8x8xbf16>, vector<8x8xf32> -> vector<8x8xf32>
    %c0_32 = arith.constant 0 : index
    %c8 = arith.constant 8 : index
    %84 = vector.load %arg22[%c0_32, %c8] : memref<8x32xf32, #tpu.memory_space<vmem>>, vector<8x8xf32>
    tpu.vector_store %arg22[%c0_32, %c8], %83 {strides = array<i32>} : memref<8x32xf32, #tpu.memory_space<vmem>>, vector<8x8xf32>,
    %85 = vector.extract_strided_slice %34 {offsets = [0, 16], sizes = [8, 8], strides = [1, 1]} : vector<8x32xf32> to vector<8x8xf32>
    %86 = arith.truncf %85 : vector<8x8xf32> to vector<8x8xbf16>
    %87 = vector.extract_strided_slice %35 {offsets = [0, 16], sizes = [8, 8], strides = [1, 1]} : vector<8x32xf32> to vector<8x8xf32>
    %88 = arith.truncf %87 : vector<8x8xf32> to vector<8x8xbf16>
    %89 = vector.extract_strided_slice %36 {offsets = [0, 16], sizes = [8, 8], strides = [1, 1]} : vector<8x32xf32> to vector<8x8xf32>
    %90 = arith.truncf %89 : vector<8x8xf32> to vector<8x8xbf16>
    "tpu.trace_start"() <{level = 10 : i32, message = "qd,kd->qk"}> : () -> ()
    %cst_33 = arith.constant dense<0.000000e+00> : vector<8x8xf32>
    %91 = tpu.matmul %86, %88, %cst_33 {dimension_numbers = #tpu.dot_dimension_numbers<[1], [1], [0], [0], [0, 0, 1, 0], [], []>} : vector<8x8xbf16>, vector<8x8xbf16>, vector<8x8xf32> -> vector<8x8xf32>
    "tpu.trace_stop"() : () -> ()
    %cst_34 = arith.constant 0.353553385 : f32
    %92 = vector.broadcast %cst_34 : f32 to vector<8x8xf32>
    %93 = arith.mulf %91, %92 : vector<8x8xf32>
    %94 = vector.broadcast %25 : vector<1x8xf32> to vector<8x8xf32>
    %95 = arith.addf %93, %94 : vector<8x8xf32>
    %cst_35 = arith.constant dense<0xFF800000> : vector<8xf32>
    %96 = vector.multi_reduction <maximumf>, %95, %cst_35 [1] : vector<8x8xf32> to vector<8xf32>
    %97 = vector.shape_cast %96 : vector<8xf32> to vector<8x1xf32>
    %98 = vector.broadcast %97 : vector<8x1xf32> to vector<8x8xf32>
    %99 = arith.subf %95, %98 : vector<8x8xf32>
    %100 = math.exp %99 : vector<8x8xf32>
    %cst_36 = arith.constant dense<0.000000e+00> : vector<8xf32>
    %101 = vector.multi_reduction <add>, %100, %cst_36 [1] : vector<8x8xf32> to vector<8xf32>
    %102 = vector.shape_cast %101 : vector<8xf32> to vector<8x1xf32>
    %103 = tpu.reciprocal %102 {approx = true} : vector<8x1xf32> -> vector<8x1xf32>
    %104 = vector.broadcast %103 : vector<8x1xf32> to vector<8x8xf32>
    %105 = arith.mulf %100, %104 : vector<8x8xf32>
    %106 = arith.truncf %105 : vector<8x8xf32> to vector<8x8xbf16>
    %cst_37 = arith.constant dense<0.000000e+00> : vector<8x8xf32>
    %107 = tpu.matmul %106, %90, %cst_37 {dimension_numbers = #tpu.dot_dimension_numbers<[1], [0], [0], [1], [0, 0, 1, 1], [], []>} : vector<8x8xbf16>, vector<8x8xbf16>, vector<8x8xf32> -> vector<8x8xf32>
    %c0_38 = arith.constant 0 : index
    %c16 = arith.constant 16 : index
    %108 = vector.load %arg22[%c0_38, %c16] : memref<8x32xf32, #tpu.memory_space<vmem>>, vector<8x8xf32>
    tpu.vector_store %arg22[%c0_38, %c16], %107 {strides = array<i32>} : memref<8x32xf32, #tpu.memory_space<vmem>>, vector<8x8xf32>,
    %109 = vector.extract_strided_slice %34 {offsets = [0, 24], sizes = [8, 8], strides = [1, 1]} : vector<8x32xf32> to vector<8x8xf32>
    %110 = arith.truncf %109 : vector<8x8xf32> to vector<8x8xbf16>
    %111 = vector.extract_strided_slice %35 {offsets = [0, 24], sizes = [8, 8], strides = [1, 1]} : vector<8x32xf32> to vector<8x8xf32>
    %112 = arith.truncf %111 : vector<8x8xf32> to vector<8x8xbf16>
    %113 = vector.extract_strided_slice %36 {offsets = [0, 24], sizes = [8, 8], strides = [1, 1]} : vector<8x32xf32> to vector<8x8xf32>
    %114 = arith.truncf %113 : vector<8x8xf32> to vector<8x8xbf16>
    "tpu.trace_start"() <{level = 10 : i32, message = "qd,kd->qk"}> : () -> ()
    %cst_39 = arith.constant dense<0.000000e+00> : vector<8x8xf32>
    %115 = tpu.matmul %110, %112, %cst_39 {dimension_numbers = #tpu.dot_dimension_numbers<[1], [1], [0], [0], [0, 0, 1, 0], [], []>} : vector<8x8xbf16>, vector<8x8xbf16>, vector<8x8xf32> -> vector<8x8xf32>
    "tpu.trace_stop"() : () -> ()
    %cst_40 = arith.constant 0.353553385 : f32
    %116 = vector.broadcast %cst_40 : f32 to vector<8x8xf32>
    %117 = arith.mulf %115, %116 : vector<8x8xf32>
    %118 = vector.broadcast %25 : vector<1x8xf32> to vector<8x8xf32>
    %119 = arith.addf %117, %118 : vector<8x8xf32>
    %cst_41 = arith.constant dense<0xFF800000> : vector<8xf32>
    %120 = vector.multi_reduction <maximumf>, %119, %cst_41 [1] : vector<8x8xf32> to vector<8xf32>
    %121 = vector.shape_cast %120 : vector<8xf32> to vector<8x1xf32>
    %122 = vector.broadcast %121 : vector<8x1xf32> to vector<8x8xf32>
    %123 = arith.subf %119, %122 : vector<8x8xf32>
    %124 = math.exp %123 : vector<8x8xf32>
    %cst_42 = arith.constant dense<0.000000e+00> : vector<8xf32>
    %125 = vector.multi_reduction <add>, %124, %cst_42 [1] : vector<8x8xf32> to vector<8xf32>
    %126 = vector.shape_cast %125 : vector<8xf32> to vector<8x1xf32>
    %127 = tpu.reciprocal %126 {approx = true} : vector<8x1xf32> -> vector<8x1xf32>
    %128 = vector.broadcast %127 : vector<8x1xf32> to vector<8x8xf32>
    %129 = arith.mulf %124, %128 : vector<8x8xf32>
    %130 = arith.truncf %129 : vector<8x8xf32> to vector<8x8xbf16>
    %cst_43 = arith.constant dense<0.000000e+00> : vector<8x8xf32>
    %131 = tpu.matmul %130, %114, %cst_43 {dimension_numbers = #tpu.dot_dimension_numbers<[1], [0], [0], [1], [0, 0, 1, 1], [], []>} : vector<8x8xbf16>, vector<8x8xbf16>, vector<8x8xf32> -> vector<8x8xf32>
    %c0_44 = arith.constant 0 : index
    %c24 = arith.constant 24 : index
    %132 = vector.load %arg22[%c0_44, %c24] : memref<8x32xf32, #tpu.memory_space<vmem>>, vector<8x8xf32>
    tpu.vector_store %arg22[%c0_44, %c24], %131 {strides = array<i32>} : memref<8x32xf32, #tpu.memory_space<vmem>>, vector<8x8xf32>,
    %c0_45 = arith.constant 0 : index
    %c0_46 = arith.constant 0 : index
    %133 = vector.load %arg22[%c0_45, %c0_46] : memref<8x32xf32, #tpu.memory_space<vmem>>, vector<8x32xf32>
    %134 = arith.truncf %133 : vector<8x32xf32> to vector<8x32xbf16>
    %c0_47 = arith.constant 0 : index
    %c0_48 = arith.constant 0 : index
    %c0_49 = arith.constant 0 : index
    %135 = vector.load %arg7[%c0_47, %c0_48, %c0_49] : memref<2x32x32xbf16, #tpu.memory_space<vmem>>, vector<1x32x32xbf16>
    %136 = vector.shape_cast %135 : vector<1x32x32xbf16> to vector<32x32xbf16>
    %cst_50 = arith.constant dense<0.000000e+00> : vector<8x32xf32>
    %137 = tpu.matmul %134, %136, %cst_50 {dimension_numbers = #tpu.dot_dimension_numbers<[1], [0], [0], [1], [0, 0, 1, 1], [], []>} : vector<8x32xbf16>, vector<32x32xbf16>, vector<8x32xf32> -> vector<8x32xf32>
    %c0_51 = arith.constant 0 : index
    %c0_52 = arith.constant 0 : index
    %c0_53 = arith.constant 0 : index
    %138 = vector.load %arg8[%c0_51, %c0_52, %c0_53] : memref<2x1x32xf32, #tpu.memory_space<vmem>>, vector<1x1x32xf32>
    %139 = vector.shape_cast %138 : vector<1x1x32xf32> to vector<1x32xf32>
    %140 = vector.broadcast %139 : vector<1x32xf32> to vector<8x32xf32>
    %141 = arith.addf %137, %140 : vector<8x32xf32>
    %142 = arith.addf %141, %23 : vector<8x32xf32>
    %c0_54 = arith.constant 0 : index
    %c0_55 = arith.constant 0 : index
    %c0_56 = arith.constant 0 : index
    %143 = vector.load %arg9[%c0_54, %c0_55, %c0_56] : memref<2x1x32xf32, #tpu.memory_space<vmem>>, vector<1x1x32xf32>
    %144 = vector.shape_cast %143 : vector<1x1x32xf32> to vector<1x32xf32>
    %c0_57 = arith.constant 0 : index
    %c0_58 = arith.constant 0 : index
    %c0_59 = arith.constant 0 : index
    %145 = vector.load %arg10[%c0_57, %c0_58, %c0_59] : memref<2x1x32xf32, #tpu.memory_space<vmem>>, vector<1x1x32xf32>
    %146 = vector.shape_cast %145 : vector<1x1x32xf32> to vector<1x32xf32>
    %cst_60 = arith.constant dense<0.000000e+00> : vector<8xf32>
    %147 = vector.multi_reduction <add>, %142, %cst_60 [1] : vector<8x32xf32> to vector<8xf32>
    %148 = vector.shape_cast %147 : vector<8xf32> to vector<8x1xf32>
    %cst_61 = arith.constant 3.200000e+01 : f32
    %149 = vector.broadcast %cst_61 : f32 to vector<8x1xf32>
    %150 = arith.divf %148, %149 : vector<8x1xf32>
    %151 = vector.broadcast %150 : vector<8x1xf32> to vector<8x32xf32>
    %152 = arith.subf %142, %151 : vector<8x32xf32>
    %153 = arith.mulf %152, %152 : vector<8x32xf32>
    %cst_62 = arith.constant dense<0.000000e+00> : vector<8xf32>
    %154 = vector.multi_reduction <add>, %153, %cst_62 [1] : vector<8x32xf32> to vector<8xf32>
    %155 = vector.shape_cast %154 : vector<8xf32> to vector<8x1xf32>
    %cst_63 = arith.constant 3.200000e+01 : f32
    %156 = vector.broadcast %cst_63 : f32 to vector<8x1xf32>
    %157 = arith.divf %155, %156 : vector<8x1xf32>
    %cst_64 = arith.constant 9.99999974E-6 : f32
    %158 = vector.broadcast %cst_64 : f32 to vector<8x1xf32>
    %159 = arith.addf %157, %158 : vector<8x1xf32>
    %160 = math.rsqrt %159 : vector<8x1xf32>
    %161 = vector.broadcast %160 : vector<8x1xf32> to vector<8x32xf32>
    %162 = arith.mulf %152, %161 : vector<8x32xf32>
    %163 = vector.broadcast %144 : vector<1x32xf32> to vector<8x32xf32>
    %164 = arith.mulf %162, %163 : vector<8x32xf32>
    %165 = vector.broadcast %146 : vector<1x32xf32> to vector<8x32xf32>
    %166 = arith.addf %164, %165 : vector<8x32xf32>
    %167 = arith.truncf %166 : vector<8x32xf32> to vector<8x32xbf16>
    %c0_65 = arith.constant 0 : index
    %c0_66 = arith.constant 0 : index
    %c0_67 = arith.constant 0 : index
    %168 = vector.load %arg11[%c0_65, %c0_66, %c0_67] : memref<2x32x64xbf16, #tpu.memory_space<vmem>>, vector<1x32x64xbf16>
    %169 = vector.shape_cast %168 : vector<1x32x64xbf16> to vector<32x64xbf16>
    %cst_68 = arith.constant dense<0.000000e+00> : vector<8x64xf32>
    %170 = tpu.matmul %167, %169, %cst_68 {dimension_numbers = #tpu.dot_dimension_numbers<[1], [0], [0], [1], [0, 0, 1, 1], [], []>} : vector<8x32xbf16>, vector<32x64xbf16>, vector<8x64xf32> -> vector<8x64xf32>
    %c0_69 = arith.constant 0 : index
    %c0_70 = arith.constant 0 : index
    %c0_71 = arith.constant 0 : index
    %171 = vector.load %arg12[%c0_69, %c0_70, %c0_71] : memref<2x1x64xf32, #tpu.memory_space<vmem>>, vector<1x1x64xf32>
    %172 = vector.shape_cast %171 : vector<1x1x64xf32> to vector<1x64xf32>
    %173 = vector.broadcast %172 : vector<1x64xf32> to vector<8x64xf32>
    %174 = arith.addf %170, %173 : vector<8x64xf32>
    %cst_72 = arith.constant 5.000000e-01 : f32
    %175 = vector.broadcast %cst_72 : f32 to vector<8x64xf32>
    %176 = arith.mulf %175, %174 : vector<8x64xf32>
    %cst_73 = arith.constant 0.707106769 : f32
    %177 = vector.broadcast %cst_73 : f32 to vector<8x64xf32>
    %178 = arith.mulf %174, %177 : vector<8x64xf32>
    %179 = math.erf %178 : vector<8x64xf32>
    %cst_74 = arith.constant 1.000000e+00 : f32
    %180 = vector.broadcast %cst_74 : f32 to vector<8x64xf32>
    %181 = arith.addf %180, %179 : vector<8x64xf32>
    %182 = arith.mulf %176, %181 : vector<8x64xf32>
    %183 = arith.truncf %182 : vector<8x64xf32> to vector<8x64xbf16>
    %c0_75 = arith.constant 0 : index
    %c0_76 = arith.constant 0 : index
    %c0_77 = arith.constant 0 : index
    %184 = vector.load %arg13[%c0_75, %c0_76, %c0_77] : memref<2x64x32xbf16, #tpu.memory_space<vmem>>, vector<1x64x32xbf16>
    %185 = vector.shape_cast %184 : vector<1x64x32xbf16> to vector<64x32xbf16>
    %cst_78 = arith.constant dense<0.000000e+00> : vector<8x32xf32>
    %186 = tpu.matmul %183, %185, %cst_78 {dimension_numbers = #tpu.dot_dimension_numbers<[1], [0], [0], [1], [0, 0, 1, 1], [], []>} : vector<8x64xbf16>, vector<64x32xbf16>, vector<8x32xf32> -> vector<8x32xf32>
    %c0_79 = arith.constant 0 : index
    %c0_80 = arith.constant 0 : index
    %c0_81 = arith.constant 0 : index
    %187 = vector.load %arg14[%c0_79, %c0_80, %c0_81] : memref<2x1x32xf32, #tpu.memory_space<vmem>>, vector<1x1x32xf32>
    %188 = vector.shape_cast %187 : vector<1x1x32xf32> to vector<1x32xf32>
    %189 = vector.broadcast %188 : vector<1x32xf32> to vector<8x32xf32>
    %190 = arith.addf %186, %189 : vector<8x32xf32>
    %191 = arith.addf %190, %166 : vector<8x32xf32>
    %c0_82 = arith.constant 0 : index
    %c0_83 = arith.constant 0 : index
    %c0_84 = arith.constant 0 : index
    %192 = vector.load %arg15[%c0_82, %c0_83, %c0_84] : memref<2x1x32xf32, #tpu.memory_space<vmem>>, vector<1x1x32xf32>
    %193 = vector.shape_cast %192 : vector<1x1x32xf32> to vector<1x32xf32>
    %c0_85 = arith.constant 0 : index
    %c0_86 = arith.constant 0 : index
    %c0_87 = arith.constant 0 : index
    %194 = vector.load %arg16[%c0_85, %c0_86, %c0_87] : memref<2x1x32xf32, #tpu.memory_space<vmem>>, vector<1x1x32xf32>
    %195 = vector.shape_cast %194 : vector<1x1x32xf32> to vector<1x32xf32>
    %cst_88 = arith.constant dense<0.000000e+00> : vector<8xf32>
    %196 = vector.multi_reduction <add>, %191, %cst_88 [1] : vector<8x32xf32> to vector<8xf32>
    %197 = vector.shape_cast %196 : vector<8xf32> to vector<8x1xf32>
    %cst_89 = arith.constant 3.200000e+01 : f32
    %198 = vector.broadcast %cst_89 : f32 to vector<8x1xf32>
    %199 = arith.divf %197, %198 : vector<8x1xf32>
    %200 = vector.broadcast %199 : vector<8x1xf32> to vector<8x32xf32>
    %201 = arith.subf %191, %200 : vector<8x32xf32>
    %202 = arith.mulf %201, %201 : vector<8x32xf32>
    %cst_90 = arith.constant dense<0.000000e+00> : vector<8xf32>
    %203 = vector.multi_reduction <add>, %202, %cst_90 [1] : vector<8x32xf32> to vector<8xf32>
    %204 = vector.shape_cast %203 : vector<8xf32> to vector<8x1xf32>
    %cst_91 = arith.constant 3.200000e+01 : f32
    %205 = vector.broadcast %cst_91 : f32 to vector<8x1xf32>
    %206 = arith.divf %204, %205 : vector<8x1xf32>
    %cst_92 = arith.constant 9.99999974E-6 : f32
    %207 = vector.broadcast %cst_92 : f32 to vector<8x1xf32>
    %208 = arith.addf %206, %207 : vector<8x1xf32>
    %209 = math.rsqrt %208 : vector<8x1xf32>
    %210 = vector.broadcast %209 : vector<8x1xf32> to vector<8x32xf32>
    %211 = arith.mulf %201, %210 : vector<8x32xf32>
    %212 = vector.broadcast %193 : vector<1x32xf32> to vector<8x32xf32>
    %213 = arith.mulf %211, %212 : vector<8x32xf32>
    %214 = vector.broadcast %195 : vector<1x32xf32> to vector<8x32xf32>
    %215 = arith.addf %213, %214 : vector<8x32xf32>
    %216 = arith.truncf %215 : vector<8x32xf32> to vector<8x32xbf16>
    %c1 = arith.constant 1 : index
    %c0_93 = arith.constant 0 : index
    %c0_94 = arith.constant 0 : index
    %217 = vector.load %arg5[%c1, %c0_93, %c0_94] : memref<2x32x96xbf16, #tpu.memory_space<vmem>>, vector<1x32x96xbf16>
    %218 = vector.shape_cast %217 : vector<1x32x96xbf16> to vector<32x96xbf16>
    %cst_95 = arith.constant dense<0.000000e+00> : vector<8x96xf32>
    %219 = tpu.matmul %216, %218, %cst_95 {dimension_numbers = #tpu.dot_dimension_numbers<[1], [0], [0], [1], [0, 0, 1, 1], [], []>} : vector<8x32xbf16>, vector<32x96xbf16>, vector<8x96xf32> -> vector<8x96xf32>
    %c1_96 = arith.constant 1 : index
    %c0_97 = arith.constant 0 : index
    %c0_98 = arith.constant 0 : index
    %220 = vector.load %arg6[%c1_96, %c0_97, %c0_98] : memref<2x1x96xf32, #tpu.memory_space<vmem>>, vector<1x1x96xf32>
    %221 = vector.shape_cast %220 : vector<1x1x96xf32> to vector<1x96xf32>
    %222 = vector.broadcast %221 : vector<1x96xf32> to vector<8x96xf32>
    %223 = arith.addf %219, %222 : vector<8x96xf32>
    %224 = vector.extract_strided_slice %223 {offsets = [0, 0], sizes = [8, 32], strides = [1, 1]} : vector<8x96xf32> to vector<8x32xf32>
    %225 = vector.extract_strided_slice %223 {offsets = [0, 32], sizes = [8, 32], strides = [1, 1]} : vector<8x96xf32> to vector<8x32xf32>
    %226 = vector.extract_strided_slice %223 {offsets = [0, 64], sizes = [8, 32], strides = [1, 1]} : vector<8x96xf32> to vector<8x32xf32>
    %227 = vector.extract_strided_slice %224 {offsets = [0, 0], sizes = [8, 8], strides = [1, 1]} : vector<8x32xf32> to vector<8x8xf32>
    %228 = arith.truncf %227 : vector<8x8xf32> to vector<8x8xbf16>
    %229 = vector.extract_strided_slice %225 {offsets = [0, 0], sizes = [8, 8], strides = [1, 1]} : vector<8x32xf32> to vector<8x8xf32>
    %230 = arith.truncf %229 : vector<8x8xf32> to vector<8x8xbf16>
    %231 = vector.extract_strided_slice %226 {offsets = [0, 0], sizes = [8, 8], strides = [1, 1]} : vector<8x32xf32> to vector<8x8xf32>
    %232 = arith.truncf %231 : vector<8x8xf32> to vector<8x8xbf16>
    "tpu.trace_start"() <{level = 10 : i32, message = "qd,kd->qk"}> : () -> ()
    %cst_99 = arith.constant dense<0.000000e+00> : vector<8x8xf32>
    %233 = tpu.matmul %228, %230, %cst_99 {dimension_numbers = #tpu.dot_dimension_numbers<[1], [1], [0], [0], [0, 0, 1, 0], [], []>} : vector<8x8xbf16>, vector<8x8xbf16>, vector<8x8xf32> -> vector<8x8xf32>
    "tpu.trace_stop"() : () -> ()
    %cst_100 = arith.constant 0.353553385 : f32
    %234 = vector.broadcast %cst_100 : f32 to vector<8x8xf32>
    %235 = arith.mulf %233, %234 : vector<8x8xf32>
    %236 = vector.broadcast %25 : vector<1x8xf32> to vector<8x8xf32>
    %237 = arith.addf %235, %236 : vector<8x8xf32>
    %cst_101 = arith.constant dense<0xFF800000> : vector<8xf32>
    %238 = vector.multi_reduction <maximumf>, %237, %cst_101 [1] : vector<8x8xf32> to vector<8xf32>
    %239 = vector.shape_cast %238 : vector<8xf32> to vector<8x1xf32>
    %240 = vector.broadcast %239 : vector<8x1xf32> to vector<8x8xf32>
    %241 = arith.subf %237, %240 : vector<8x8xf32>
    %242 = math.exp %241 : vector<8x8xf32>
    %cst_102 = arith.constant dense<0.000000e+00> : vector<8xf32>
    %243 = vector.multi_reduction <add>, %242, %cst_102 [1] : vector<8x8xf32> to vector<8xf32>
    %244 = vector.shape_cast %243 : vector<8xf32> to vector<8x1xf32>
    %245 = tpu.reciprocal %244 {approx = true} : vector<8x1xf32> -> vector<8x1xf32>
    %246 = vector.broadcast %245 : vector<8x1xf32> to vector<8x8xf32>
    %247 = arith.mulf %242, %246 : vector<8x8xf32>
    %248 = arith.truncf %247 : vector<8x8xf32> to vector<8x8xbf16>
    %cst_103 = arith.constant dense<0.000000e+00> : vector<8x8xf32>
    %249 = tpu.matmul %248, %232, %cst_103 {dimension_numbers = #tpu.dot_dimension_numbers<[1], [0], [0], [1], [0, 0, 1, 1], [], []>} : vector<8x8xbf16>, vector<8x8xbf16>, vector<8x8xf32> -> vector<8x8xf32>
    %c0_104 = arith.constant 0 : index
    %c0_105 = arith.constant 0 : index
    %250 = vector.load %arg22[%c0_104, %c0_105] : memref<8x32xf32, #tpu.memory_space<vmem>>, vector<8x8xf32>
    tpu.vector_store %arg22[%c0_104, %c0_105], %249 {strides = array<i32>} : memref<8x32xf32, #tpu.memory_space<vmem>>, vector<8x8xf32>,
    %251 = vector.extract_strided_slice %224 {offsets = [0, 8], sizes = [8, 8], strides = [1, 1]} : vector<8x32xf32> to vector<8x8xf32>
    %252 = arith.truncf %251 : vector<8x8xf32> to vector<8x8xbf16>
    %253 = vector.extract_strided_slice %225 {offsets = [0, 8], sizes = [8, 8], strides = [1, 1]} : vector<8x32xf32> to vector<8x8xf32>
    %254 = arith.truncf %253 : vector<8x8xf32> to vector<8x8xbf16>
    %255 = vector.extract_strided_slice %226 {offsets = [0, 8], sizes = [8, 8], strides = [1, 1]} : vector<8x32xf32> to vector<8x8xf32>
    %256 = arith.truncf %255 : vector<8x8xf32> to vector<8x8xbf16>
    "tpu.trace_start"() <{level = 10 : i32, message = "qd,kd->qk"}> : () -> ()
    %cst_106 = arith.constant dense<0.000000e+00> : vector<8x8xf32>
    %257 = tpu.matmul %252, %254, %cst_106 {dimension_numbers = #tpu.dot_dimension_numbers<[1], [1], [0], [0], [0, 0, 1, 0], [], []>} : vector<8x8xbf16>, vector<8x8xbf16>, vector<8x8xf32> -> vector<8x8xf32>
    "tpu.trace_stop"() : () -> ()
    %cst_107 = arith.constant 0.353553385 : f32
    %258 = vector.broadcast %cst_107 : f32 to vector<8x8xf32>
    %259 = arith.mulf %257, %258 : vector<8x8xf32>
    %260 = vector.broadcast %25 : vector<1x8xf32> to vector<8x8xf32>
    %261 = arith.addf %259, %260 : vector<8x8xf32>
    %cst_108 = arith.constant dense<0xFF800000> : vector<8xf32>
    %262 = vector.multi_reduction <maximumf>, %261, %cst_108 [1] : vector<8x8xf32> to vector<8xf32>
    %263 = vector.shape_cast %262 : vector<8xf32> to vector<8x1xf32>
    %264 = vector.broadcast %263 : vector<8x1xf32> to vector<8x8xf32>
    %265 = arith.subf %261, %264 : vector<8x8xf32>
    %266 = math.exp %265 : vector<8x8xf32>
    %cst_109 = arith.constant dense<0.000000e+00> : vector<8xf32>
    %267 = vector.multi_reduction <add>, %266, %cst_109 [1] : vector<8x8xf32> to vector<8xf32>
    %268 = vector.shape_cast %267 : vector<8xf32> to vector<8x1xf32>
    %269 = tpu.reciprocal %268 {approx = true} : vector<8x1xf32> -> vector<8x1xf32>
    %270 = vector.broadcast %269 : vector<8x1xf32> to vector<8x8xf32>
    %271 = arith.mulf %266, %270 : vector<8x8xf32>
    %272 = arith.truncf %271 : vector<8x8xf32> to vector<8x8xbf16>
    %cst_110 = arith.constant dense<0.000000e+00> : vector<8x8xf32>
    %273 = tpu.matmul %272, %256, %cst_110 {dimension_numbers = #tpu.dot_dimension_numbers<[1], [0], [0], [1], [0, 0, 1, 1], [], []>} : vector<8x8xbf16>, vector<8x8xbf16>, vector<8x8xf32> -> vector<8x8xf32>
    %c0_111 = arith.constant 0 : index
    %c8_112 = arith.constant 8 : index
    %274 = vector.load %arg22[%c0_111, %c8_112] : memref<8x32xf32, #tpu.memory_space<vmem>>, vector<8x8xf32>
    tpu.vector_store %arg22[%c0_111, %c8_112], %273 {strides = array<i32>} : memref<8x32xf32, #tpu.memory_space<vmem>>, vector<8x8xf32>,
    %275 = vector.extract_strided_slice %224 {offsets = [0, 16], sizes = [8, 8], strides = [1, 1]} : vector<8x32xf32> to vector<8x8xf32>
    %276 = arith.truncf %275 : vector<8x8xf32> to vector<8x8xbf16>
    %277 = vector.extract_strided_slice %225 {offsets = [0, 16], sizes = [8, 8], strides = [1, 1]} : vector<8x32xf32> to vector<8x8xf32>
    %278 = arith.truncf %277 : vector<8x8xf32> to vector<8x8xbf16>
    %279 = vector.extract_strided_slice %226 {offsets = [0, 16], sizes = [8, 8], strides = [1, 1]} : vector<8x32xf32> to vector<8x8xf32>
    %280 = arith.truncf %279 : vector<8x8xf32> to vector<8x8xbf16>
    "tpu.trace_start"() <{level = 10 : i32, message = "qd,kd->qk"}> : () -> ()
    %cst_113 = arith.constant dense<0.000000e+00> : vector<8x8xf32>
    %281 = tpu.matmul %276, %278, %cst_113 {dimension_numbers = #tpu.dot_dimension_numbers<[1], [1], [0], [0], [0, 0, 1, 0], [], []>} : vector<8x8xbf16>, vector<8x8xbf16>, vector<8x8xf32> -> vector<8x8xf32>
    "tpu.trace_stop"() : () -> ()
    %cst_114 = arith.constant 0.353553385 : f32
    %282 = vector.broadcast %cst_114 : f32 to vector<8x8xf32>
    %283 = arith.mulf %281, %282 : vector<8x8xf32>
    %284 = vector.broadcast %25 : vector<1x8xf32> to vector<8x8xf32>
    %285 = arith.addf %283, %284 : vector<8x8xf32>
    %cst_115 = arith.constant dense<0xFF800000> : vector<8xf32>
    %286 = vector.multi_reduction <maximumf>, %285, %cst_115 [1] : vector<8x8xf32> to vector<8xf32>
    %287 = vector.shape_cast %286 : vector<8xf32> to vector<8x1xf32>
    %288 = vector.broadcast %287 : vector<8x1xf32> to vector<8x8xf32>
    %289 = arith.subf %285, %288 : vector<8x8xf32>
    %290 = math.exp %289 : vector<8x8xf32>
    %cst_116 = arith.constant dense<0.000000e+00> : vector<8xf32>
    %291 = vector.multi_reduction <add>, %290, %cst_116 [1] : vector<8x8xf32> to vector<8xf32>
    %292 = vector.shape_cast %291 : vector<8xf32> to vector<8x1xf32>
    %293 = tpu.reciprocal %292 {approx = true} : vector<8x1xf32> -> vector<8x1xf32>
    %294 = vector.broadcast %293 : vector<8x1xf32> to vector<8x8xf32>
    %295 = arith.mulf %290, %294 : vector<8x8xf32>
    %296 = arith.truncf %295 : vector<8x8xf32> to vector<8x8xbf16>
    %cst_117 = arith.constant dense<0.000000e+00> : vector<8x8xf32>
    %297 = tpu.matmul %296, %280, %cst_117 {dimension_numbers = #tpu.dot_dimension_numbers<[1], [0], [0], [1], [0, 0, 1, 1], [], []>} : vector<8x8xbf16>, vector<8x8xbf16>, vector<8x8xf32> -> vector<8x8xf32>
    %c0_118 = arith.constant 0 : index
    %c16_119 = arith.constant 16 : index
    %298 = vector.load %arg22[%c0_118, %c16_119] : memref<8x32xf32, #tpu.memory_space<vmem>>, vector<8x8xf32>
    tpu.vector_store %arg22[%c0_118, %c16_119], %297 {strides = array<i32>} : memref<8x32xf32, #tpu.memory_space<vmem>>, vector<8x8xf32>,
    %299 = vector.extract_strided_slice %224 {offsets = [0, 24], sizes = [8, 8], strides = [1, 1]} : vector<8x32xf32> to vector<8x8xf32>
    %300 = arith.truncf %299 : vector<8x8xf32> to vector<8x8xbf16>
    %301 = vector.extract_strided_slice %225 {offsets = [0, 24], sizes = [8, 8], strides = [1, 1]} : vector<8x32xf32> to vector<8x8xf32>
    %302 = arith.truncf %301 : vector<8x8xf32> to vector<8x8xbf16>
    %303 = vector.extract_strided_slice %226 {offsets = [0, 24], sizes = [8, 8], strides = [1, 1]} : vector<8x32xf32> to vector<8x8xf32>
    %304 = arith.truncf %303 : vector<8x8xf32> to vector<8x8xbf16>
    "tpu.trace_start"() <{level = 10 : i32, message = "qd,kd->qk"}> : () -> ()
    %cst_120 = arith.constant dense<0.000000e+00> : vector<8x8xf32>
    %305 = tpu.matmul %300, %302, %cst_120 {dimension_numbers = #tpu.dot_dimension_numbers<[1], [1], [0], [0], [0, 0, 1, 0], [], []>} : vector<8x8xbf16>, vector<8x8xbf16>, vector<8x8xf32> -> vector<8x8xf32>
    "tpu.trace_stop"() : () -> ()
    %cst_121 = arith.constant 0.353553385 : f32
    %306 = vector.broadcast %cst_121 : f32 to vector<8x8xf32>
    %307 = arith.mulf %305, %306 : vector<8x8xf32>
    %308 = vector.broadcast %25 : vector<1x8xf32> to vector<8x8xf32>
    %309 = arith.addf %307, %308 : vector<8x8xf32>
    %cst_122 = arith.constant dense<0xFF800000> : vector<8xf32>
    %310 = vector.multi_reduction <maximumf>, %309, %cst_122 [1] : vector<8x8xf32> to vector<8xf32>
    %311 = vector.shape_cast %310 : vector<8xf32> to vector<8x1xf32>
    %312 = vector.broadcast %311 : vector<8x1xf32> to vector<8x8xf32>
    %313 = arith.subf %309, %312 : vector<8x8xf32>
    %314 = math.exp %313 : vector<8x8xf32>
    %cst_123 = arith.constant dense<0.000000e+00> : vector<8xf32>
    %315 = vector.multi_reduction <add>, %314, %cst_123 [1] : vector<8x8xf32> to vector<8xf32>
    %316 = vector.shape_cast %315 : vector<8xf32> to vector<8x1xf32>
    %317 = tpu.reciprocal %316 {approx = true} : vector<8x1xf32> -> vector<8x1xf32>
    %318 = vector.broadcast %317 : vector<8x1xf32> to vector<8x8xf32>
    %319 = arith.mulf %314, %318 : vector<8x8xf32>
    %320 = arith.truncf %319 : vector<8x8xf32> to vector<8x8xbf16>
    %cst_124 = arith.constant dense<0.000000e+00> : vector<8x8xf32>
    %321 = tpu.matmul %320, %304, %cst_124 {dimension_numbers = #tpu.dot_dimension_numbers<[1], [0], [0], [1], [0, 0, 1, 1], [], []>} : vector<8x8xbf16>, vector<8x8xbf16>, vector<8x8xf32> -> vector<8x8xf32>
    %c0_125 = arith.constant 0 : index
    %c24_126 = arith.constant 24 : index
    %322 = vector.load %arg22[%c0_125, %c24_126] : memref<8x32xf32, #tpu.memory_space<vmem>>, vector<8x8xf32>
    tpu.vector_store %arg22[%c0_125, %c24_126], %321 {strides = array<i32>} : memref<8x32xf32, #tpu.memory_space<vmem>>, vector<8x8xf32>,
    %c0_127 = arith.constant 0 : index
    %c0_128 = arith.constant 0 : index
    %323 = vector.load %arg22[%c0_127, %c0_128] : memref<8x32xf32, #tpu.memory_space<vmem>>, vector<8x32xf32>
    %324 = arith.truncf %323 : vector<8x32xf32> to vector<8x32xbf16>
    %c1_129 = arith.constant 1 : index
    %c0_130 = arith.constant 0 : index
    %c0_131 = arith.constant 0 : index
    %325 = vector.load %arg7[%c1_129, %c0_130, %c0_131] : memref<2x32x32xbf16, #tpu.memory_space<vmem>>, vector<1x32x32xbf16>
    %326 = vector.shape_cast %325 : vector<1x32x32xbf16> to vector<32x32xbf16>
    %cst_132 = arith.constant dense<0.000000e+00> : vector<8x32xf32>
    %327 = tpu.matmul %324, %326, %cst_132 {dimension_numbers = #tpu.dot_dimension_numbers<[1], [0], [0], [1], [0, 0, 1, 1], [], []>} : vector<8x32xbf16>, vector<32x32xbf16>, vector<8x32xf32> -> vector<8x32xf32>
    %c1_133 = arith.constant 1 : index
    %c0_134 = arith.constant 0 : index
    %c0_135 = arith.constant 0 : index
    %328 = vector.load %arg8[%c1_133, %c0_134, %c0_135] : memref<2x1x32xf32, #tpu.memory_space<vmem>>, vector<1x1x32xf32>
    %329 = vector.shape_cast %328 : vector<1x1x32xf32> to vector<1x32xf32>
    %330 = vector.broadcast %329 : vector<1x32xf32> to vector<8x32xf32>
    %331 = arith.addf %327, %330 : vector<8x32xf32>
    %332 = arith.addf %331, %215 : vector<8x32xf32>
    %c1_136 = arith.constant 1 : index
    %c0_137 = arith.constant 0 : index
    %c0_138 = arith.constant 0 : index
    %333 = vector.load %arg9[%c1_136, %c0_137, %c0_138] : memref<2x1x32xf32, #tpu.memory_space<vmem>>, vector<1x1x32xf32>
    %334 = vector.shape_cast %333 : vector<1x1x32xf32> to vector<1x32xf32>
    %c1_139 = arith.constant 1 : index
    %c0_140 = arith.constant 0 : index
    %c0_141 = arith.constant 0 : index
    %335 = vector.load %arg10[%c1_139, %c0_140, %c0_141] : memref<2x1x32xf32, #tpu.memory_space<vmem>>, vector<1x1x32xf32>
    %336 = vector.shape_cast %335 : vector<1x1x32xf32> to vector<1x32xf32>
    %cst_142 = arith.constant dense<0.000000e+00> : vector<8xf32>
    %337 = vector.multi_reduction <add>, %332, %cst_142 [1] : vector<8x32xf32> to vector<8xf32>
    %338 = vector.shape_cast %337 : vector<8xf32> to vector<8x1xf32>
    %cst_143 = arith.constant 3.200000e+01 : f32
    %339 = vector.broadcast %cst_143 : f32 to vector<8x1xf32>
    %340 = arith.divf %338, %339 : vector<8x1xf32>
    %341 = vector.broadcast %340 : vector<8x1xf32> to vector<8x32xf32>
    %342 = arith.subf %332, %341 : vector<8x32xf32>
    %343 = arith.mulf %342, %342 : vector<8x32xf32>
    %cst_144 = arith.constant dense<0.000000e+00> : vector<8xf32>
    %344 = vector.multi_reduction <add>, %343, %cst_144 [1] : vector<8x32xf32> to vector<8xf32>
    %345 = vector.shape_cast %344 : vector<8xf32> to vector<8x1xf32>
    %cst_145 = arith.constant 3.200000e+01 : f32
    %346 = vector.broadcast %cst_145 : f32 to vector<8x1xf32>
    %347 = arith.divf %345, %346 : vector<8x1xf32>
    %cst_146 = arith.constant 9.99999974E-6 : f32
    %348 = vector.broadcast %cst_146 : f32 to vector<8x1xf32>
    %349 = arith.addf %347, %348 : vector<8x1xf32>
    %350 = math.rsqrt %349 : vector<8x1xf32>
    %351 = vector.broadcast %350 : vector<8x1xf32> to vector<8x32xf32>
    %352 = arith.mulf %342, %351 : vector<8x32xf32>
    %353 = vector.broadcast %334 : vector<1x32xf32> to vector<8x32xf32>
    %354 = arith.mulf %352, %353 : vector<8x32xf32>
    %355 = vector.broadcast %336 : vector<1x32xf32> to vector<8x32xf32>
    %356 = arith.addf %354, %355 : vector<8x32xf32>
    %357 = arith.truncf %356 : vector<8x32xf32> to vector<8x32xbf16>
    %c1_147 = arith.constant 1 : index
    %c0_148 = arith.constant 0 : index
    %c0_149 = arith.constant 0 : index
    %358 = vector.load %arg11[%c1_147, %c0_148, %c0_149] : memref<2x32x64xbf16, #tpu.memory_space<vmem>>, vector<1x32x64xbf16>
    %359 = vector.shape_cast %358 : vector<1x32x64xbf16> to vector<32x64xbf16>
    %cst_150 = arith.constant dense<0.000000e+00> : vector<8x64xf32>
    %360 = tpu.matmul %357, %359, %cst_150 {dimension_numbers = #tpu.dot_dimension_numbers<[1], [0], [0], [1], [0, 0, 1, 1], [], []>} : vector<8x32xbf16>, vector<32x64xbf16>, vector<8x64xf32> -> vector<8x64xf32>
    %c1_151 = arith.constant 1 : index
    %c0_152 = arith.constant 0 : index
    %c0_153 = arith.constant 0 : index
    %361 = vector.load %arg12[%c1_151, %c0_152, %c0_153] : memref<2x1x64xf32, #tpu.memory_space<vmem>>, vector<1x1x64xf32>
    %362 = vector.shape_cast %361 : vector<1x1x64xf32> to vector<1x64xf32>
    %363 = vector.broadcast %362 : vector<1x64xf32> to vector<8x64xf32>
    %364 = arith.addf %360, %363 : vector<8x64xf32>
    %cst_154 = arith.constant 5.000000e-01 : f32
    %365 = vector.broadcast %cst_154 : f32 to vector<8x64xf32>
    %366 = arith.mulf %365, %364 : vector<8x64xf32>
    %cst_155 = arith.constant 0.707106769 : f32
    %367 = vector.broadcast %cst_155 : f32 to vector<8x64xf32>
    %368 = arith.mulf %364, %367 : vector<8x64xf32>
    %369 = math.erf %368 : vector<8x64xf32>
    %cst_156 = arith.constant 1.000000e+00 : f32
    %370 = vector.broadcast %cst_156 : f32 to vector<8x64xf32>
    %371 = arith.addf %370, %369 : vector<8x64xf32>
    %372 = arith.mulf %366, %371 : vector<8x64xf32>
    %373 = arith.truncf %372 : vector<8x64xf32> to vector<8x64xbf16>
    %c1_157 = arith.constant 1 : index
    %c0_158 = arith.constant 0 : index
    %c0_159 = arith.constant 0 : index
    %374 = vector.load %arg13[%c1_157, %c0_158, %c0_159] : memref<2x64x32xbf16, #tpu.memory_space<vmem>>, vector<1x64x32xbf16>
    %375 = vector.shape_cast %374 : vector<1x64x32xbf16> to vector<64x32xbf16>
    %cst_160 = arith.constant dense<0.000000e+00> : vector<8x32xf32>
    %376 = tpu.matmul %373, %375, %cst_160 {dimension_numbers = #tpu.dot_dimension_numbers<[1], [0], [0], [1], [0, 0, 1, 1], [], []>} : vector<8x64xbf16>, vector<64x32xbf16>, vector<8x32xf32> -> vector<8x32xf32>
    %c1_161 = arith.constant 1 : index
    %c0_162 = arith.constant 0 : index
    %c0_163 = arith.constant 0 : index
    %377 = vector.load %arg14[%c1_161, %c0_162, %c0_163] : memref<2x1x32xf32, #tpu.memory_space<vmem>>, vector<1x1x32xf32>
    %378 = vector.shape_cast %377 : vector<1x1x32xf32> to vector<1x32xf32>
    %379 = vector.broadcast %378 : vector<1x32xf32> to vector<8x32xf32>
    %380 = arith.addf %376, %379 : vector<8x32xf32>
    %381 = arith.addf %380, %356 : vector<8x32xf32>
    %c1_164 = arith.constant 1 : index
    %c0_165 = arith.constant 0 : index
    %c0_166 = arith.constant 0 : index
    %382 = vector.load %arg15[%c1_164, %c0_165, %c0_166] : memref<2x1x32xf32, #tpu.memory_space<vmem>>, vector<1x1x32xf32>
    %383 = vector.shape_cast %382 : vector<1x1x32xf32> to vector<1x32xf32>
    %c1_167 = arith.constant 1 : index
    %c0_168 = arith.constant 0 : index
    %c0_169 = arith.constant 0 : index
    %384 = vector.load %arg16[%c1_167, %c0_168, %c0_169] : memref<2x1x32xf32, #tpu.memory_space<vmem>>, vector<1x1x32xf32>
    %385 = vector.shape_cast %384 : vector<1x1x32xf32> to vector<1x32xf32>
    %cst_170 = arith.constant dense<0.000000e+00> : vector<8xf32>
    %386 = vector.multi_reduction <add>, %381, %cst_170 [1] : vector<8x32xf32> to vector<8xf32>
    %387 = vector.shape_cast %386 : vector<8xf32> to vector<8x1xf32>
    %cst_171 = arith.constant 3.200000e+01 : f32
    %388 = vector.broadcast %cst_171 : f32 to vector<8x1xf32>
    %389 = arith.divf %387, %388 : vector<8x1xf32>
    %390 = vector.broadcast %389 : vector<8x1xf32> to vector<8x32xf32>
    %391 = arith.subf %381, %390 : vector<8x32xf32>
    %392 = arith.mulf %391, %391 : vector<8x32xf32>
    %cst_172 = arith.constant dense<0.000000e+00> : vector<8xf32>
    %393 = vector.multi_reduction <add>, %392, %cst_172 [1] : vector<8x32xf32> to vector<8xf32>
    %394 = vector.shape_cast %393 : vector<8xf32> to vector<8x1xf32>
    %cst_173 = arith.constant 3.200000e+01 : f32
    %395 = vector.broadcast %cst_173 : f32 to vector<8x1xf32>
    %396 = arith.divf %394, %395 : vector<8x1xf32>
    %cst_174 = arith.constant 9.99999974E-6 : f32
    %397 = vector.broadcast %cst_174 : f32 to vector<8x1xf32>
    %398 = arith.addf %396, %397 : vector<8x1xf32>
    %399 = math.rsqrt %398 : vector<8x1xf32>
    %400 = vector.broadcast %399 : vector<8x1xf32> to vector<8x32xf32>
    %401 = arith.mulf %391, %400 : vector<8x32xf32>
    %402 = vector.broadcast %383 : vector<1x32xf32> to vector<8x32xf32>
    %403 = arith.mulf %401, %402 : vector<8x32xf32>
    %404 = vector.broadcast %385 : vector<1x32xf32> to vector<8x32xf32>
    %405 = arith.addf %403, %404 : vector<8x32xf32>
    %406 = vector.extract_strided_slice %405 {offsets = [0, 0], sizes = [1, 32], strides = [1, 1]} : vector<8x32xf32> to vector<1x32xf32>
    %407 = arith.truncf %406 : vector<1x32xf32> to vector<1x32xbf16>
    %c0_175 = arith.constant 0 : index
    %c0_176 = arith.constant 0 : index
    %408 = vector.load %arg17[%c0_175, %c0_176] : memref<32x32xbf16, #tpu.memory_space<vmem>>, vector<32x32xbf16>
    %cst_177 = arith.constant dense<0.000000e+00> : vector<1x32xf32>
    %409 = tpu.matmul %407, %408, %cst_177 {dimension_numbers = #tpu.dot_dimension_numbers<[1], [0], [0], [1], [0, 0, 1, 1], [], []>} : vector<1x32xbf16>, vector<32x32xbf16>, vector<1x32xf32> -> vector<1x32xf32>
    %c0_178 = arith.constant 0 : index
    %c0_179 = arith.constant 0 : index
    %410 = vector.load %arg18[%c0_178, %c0_179] : memref<1x32xf32, #tpu.memory_space<vmem>>, vector<1x32xf32>
    %411 = arith.addf %409, %410 : vector<1x32xf32>
    %412 = math.tanh %411 : vector<1x32xf32>
    %413 = arith.truncf %412 : vector<1x32xf32> to vector<1x32xbf16>
    %c0_180 = arith.constant 0 : index
    %c0_181 = arith.constant 0 : index
    %414 = vector.load %arg19[%c0_180, %c0_181] : memref<32x3xbf16, #tpu.memory_space<vmem>>, vector<32x3xbf16>
    %cst_182 = arith.constant dense<0.000000e+00> : vector<1x3xf32>
    %415 = tpu.matmul %413, %414, %cst_182 {dimension_numbers = #tpu.dot_dimension_numbers<[1], [0], [0], [1], [0, 0, 1, 1], [], []>} : vector<1x32xbf16>, vector<32x3xbf16>, vector<1x3xf32> -> vector<1x3xf32>
    %c0_183 = arith.constant 0 : index
    %c0_184 = arith.constant 0 : index
    %416 = vector.load %arg20[%c0_183, %c0_184] : memref<1x3xf32, #tpu.memory_space<vmem>>, vector<1x3xf32>
    %417 = arith.addf %415, %416 : vector<1x3xf32>
    %418 = vector.shape_cast %417 : vector<1x3xf32> to vector<1x1x3xf32>
    %c0_185 = arith.constant 0 : index
    %c0_186 = arith.constant 0 : index
    %c0_187 = arith.constant 0 : index
    %419 = vector.load %arg21[%c0_185, %c0_186, %c0_187] : memref<1x1x3xf32, #tpu.memory_space<vmem>>, vector<1x1x3xf32>
    tpu.vector_store %arg21[%c0_185, %c0_186, %c0_187], %418 {strides = array<i32>} : memref<1x1x3xf32, #tpu.memory_space<vmem>>, vector<1x1x3xf32>,
    return
  }
  func.func @transform_0(%arg0: i32) -> (i32, i32, i32) {
    %c0_i32 = arith.constant 0 : i32
    %c0_i32_0 = arith.constant 0 : i32
    %c0_i32_1 = arith.constant 0 : i32
    return %arg0, %c0_i32, %c0_i32_0 : i32, i32, i32
  }
  func.func @transform_1(%arg0: i32) -> (i32, i32, i32) {
    %c0_i32 = arith.constant 0 : i32
    %c0_i32_0 = arith.constant 0 : i32
    %c0_i32_1 = arith.constant 0 : i32
    return %arg0, %c0_i32, %c0_i32_0 : i32, i32, i32
  }
  func.func @transform_2(%arg0: i32) -> (i32, i32) {
    %c0_i32 = arith.constant 0 : i32
    %c0_i32_0 = arith.constant 0 : i32
    %c0_i32_1 = arith.constant 0 : i32
    return %c0_i32, %c0_i32_0 : i32, i32
  }
  func.func @transform_3(%arg0: i32) -> (i32, i32) {
    %c0_i32 = arith.constant 0 : i32
    %c0_i32_0 = arith.constant 0 : i32
    %c0_i32_1 = arith.constant 0 : i32
    return %c0_i32, %c0_i32_0 : i32, i32
  }
  func.func @transform_4(%arg0: i32) -> (i32, i32, i32) {
    %c0_i32 = arith.constant 0 : i32
    %c0_i32_0 = arith.constant 0 : i32
    %c0_i32_1 = arith.constant 0 : i32
    %c0_i32_2 = arith.constant 0 : i32
    return %c0_i32, %c0_i32_0, %c0_i32_1 : i32, i32, i32
  }
  func.func @transform_5(%arg0: i32) -> (i32, i32, i32) {
    %c0_i32 = arith.constant 0 : i32
    %c0_i32_0 = arith.constant 0 : i32
    %c0_i32_1 = arith.constant 0 : i32
    %c0_i32_2 = arith.constant 0 : i32
    return %c0_i32, %c0_i32_0, %c0_i32_1 : i32, i32, i32
  }
  func.func @transform_6(%arg0: i32) -> (i32, i32, i32) {
    %c0_i32 = arith.constant 0 : i32
    %c0_i32_0 = arith.constant 0 : i32
    %c0_i32_1 = arith.constant 0 : i32
    %c0_i32_2 = arith.constant 0 : i32
    return %c0_i32, %c0_i32_0, %c0_i32_1 : i32, i32, i32
  }
  func.func @transform_7(%arg0: i32) -> (i32, i32, i32) {
    %c0_i32 = arith.constant 0 : i32
    %c0_i32_0 = arith.constant 0 : i32
    %c0_i32_1 = arith.constant 0 : i32
    %c0_i32_2 = arith.constant 0 : i32
    return %c0_i32, %c0_i32_0, %c0_i32_1 : i32, i32, i32
  }
  func.func @transform_8(%arg0: i32) -> (i32, i32, i32) {
    %c0_i32 = arith.constant 0 : i32
    %c0_i32_0 = arith.constant 0 : i32
    %c0_i32_1 = arith.constant 0 : i32
    %c0_i32_2 = arith.constant 0 : i32
    return %c0_i32, %c0_i32_0, %c0_i32_1 : i32, i32, i32
  }
  func.func @transform_9(%arg0: i32) -> (i32, i32, i32) {
    %c0_i32 = arith.constant 0 : i32
    %c0_i32_0 = arith.constant 0 : i32
    %c0_i32_1 = arith.constant 0 : i32
    %c0_i32_2 = arith.constant 0 : i32
    return %c0_i32, %c0_i32_0, %c0_i32_1 : i32, i32, i32
  }
  func.func @transform_10(%arg0: i32) -> (i32, i32, i32) {
    %c0_i32 = arith.constant 0 : i32
    %c0_i32_0 = arith.constant 0 : i32
    %c0_i32_1 = arith.constant 0 : i32
    %c0_i32_2 = arith.constant 0 : i32
    return %c0_i32, %c0_i32_0, %c0_i32_1 : i32, i32, i32
  }
  func.func @transform_11(%arg0: i32) -> (i32, i32, i32) {
    %c0_i32 = arith.constant 0 : i32
    %c0_i32_0 = arith.constant 0 : i32
    %c0_i32_1 = arith.constant 0 : i32
    %c0_i32_2 = arith.constant 0 : i32
    return %c0_i32, %c0_i32_0, %c0_i32_1 : i32, i32, i32
  }
  func.func @transform_12(%arg0: i32) -> (i32, i32, i32) {
    %c0_i32 = arith.constant 0 : i32
    %c0_i32_0 = arith.constant 0 : i32
    %c0_i32_1 = arith.constant 0 : i32
    %c0_i32_2 = arith.constant 0 : i32
    return %c0_i32, %c0_i32_0, %c0_i32_1 : i32, i32, i32
  }
  func.func @transform_13(%arg0: i32) -> (i32, i32, i32) {
    %c0_i32 = arith.constant 0 : i32
    %c0_i32_0 = arith.constant 0 : i32
    %c0_i32_1 = arith.constant 0 : i32
    %c0_i32_2 = arith.constant 0 : i32
    return %c0_i32, %c0_i32_0, %c0_i32_1 : i32, i32, i32
  }
  func.func @transform_14(%arg0: i32) -> (i32, i32, i32) {
    %c0_i32 = arith.constant 0 : i32
    %c0_i32_0 = arith.constant 0 : i32
    %c0_i32_1 = arith.constant 0 : i32
    %c0_i32_2 = arith.constant 0 : i32
    return %c0_i32, %c0_i32_0, %c0_i32_1 : i32, i32, i32
  }
  func.func @transform_15(%arg0: i32) -> (i32, i32, i32) {
    %c0_i32 = arith.constant 0 : i32
    %c0_i32_0 = arith.constant 0 : i32
    %c0_i32_1 = arith.constant 0 : i32
    %c0_i32_2 = arith.constant 0 : i32
    return %c0_i32, %c0_i32_0, %c0_i32_1 : i32, i32, i32
  }
  func.func @transform_16(%arg0: i32) -> (i32, i32) {
    %c0_i32 = arith.constant 0 : i32
    %c0_i32_0 = arith.constant 0 : i32
    %c0_i32_1 = arith.constant 0 : i32
    return %c0_i32, %c0_i32_0 : i32, i32
  }
  func.func @transform_17(%arg0: i32) -> (i32, i32) {
    %c0_i32 = arith.constant 0 : i32
    %c0_i32_0 = arith.constant 0 : i32
    %c0_i32_1 = arith.constant 0 : i32
    return %c0_i32, %c0_i32_0 : i32, i32
  }
  func.func @transform_18(%arg0: i32) -> (i32, i32) {
    %c0_i32 = arith.constant 0 : i32
    %c0_i32_0 = arith.constant 0 : i32
    %c0_i32_1 = arith.constant 0 : i32
    return %c0_i32, %c0_i32_0 : i32, i32
  }
  func.func @transform_19(%arg0: i32) -> (i32, i32) {
    %c0_i32 = arith.constant 0 : i32
    %c0_i32_0 = arith.constant 0 : i32
    %c0_i32_1 = arith.constant 0 : i32
    return %c0_i32, %c0_i32_0 : i32, i32
  }
  func.func @transform_20(%arg0: i32) -> (i32, i32, i32) {
    %c0_i32 = arith.constant 0 : i32
    %c0_i32_0 = arith.constant 0 : i32
    %c0_i32_1 = arith.constant 0 : i32
    return %arg0, %c0_i32, %c0_i32_0 : i32, i32, i32
  }
}

</mosaic_0001>

<llo_original>
// kernel: roberta_classifier_forward.1
$region0: #{roberta_classifier_forward.1}
  #allocation0 [shape = 'u32[]', space=smem, size = 0x4, offset = 0x4, fixed_abs, tag = 'smem constant byte address 0x4 - core index']
  #allocation1 [shape = 'u32[72,128]{1,0:T(1,128)}', space=vmem, size = 0x9000, scoped, tag = 'internal scratch']
  #allocation2 [shape = 'f32[8,32]{1,0:T(8,128)}', space=vmem, size = 0x1000, scoped, tag = 'scratch operand']
  %s0 = inlined_call_operand.vmem [shape: f32[2,8,32], index: 0, kind: input, shape index: {}]
  %s1 = inlined_call_operand.vmem [shape: f32[2,1,8], index: 1, kind: input, shape index: {}]
  %s2 = inlined_call_operand.vmem [shape: f32[1,32], index: 2, kind: input, shape index: {}]
  %s3 = inlined_call_operand.vmem [shape: f32[1,32], index: 3, kind: input, shape index: {}]
  %s4 = inlined_call_operand.vmem [shape: bf16[2,32,96], index: 4, kind: input, shape index: {}]
  %s5 = inlined_call_operand.vmem [shape: f32[2,1,96], index: 5, kind: input, shape index: {}]
  %s6 = inlined_call_operand.vmem [shape: bf16[2,32,32], index: 6, kind: input, shape index: {}]
  %s7 = inlined_call_operand.vmem [shape: f32[2,1,32], index: 7, kind: input, shape index: {}]
  %s8 = inlined_call_operand.vmem [shape: f32[2,1,32], index: 8, kind: input, shape index: {}]
  %s9 = inlined_call_operand.vmem [shape: f32[2,1,32], index: 9, kind: input, shape index: {}]
  %s10 = inlined_call_operand.vmem [shape: bf16[2,32,64], index: 10, kind: input, shape index: {}]
  %s11 = inlined_call_operand.vmem [shape: f32[2,1,64], index: 11, kind: input, shape index: {}]
  %s12 = inlined_call_operand.vmem [shape: bf16[2,64,32], index: 12, kind: input, shape index: {}]
  %s13 = inlined_call_operand.vmem [shape: f32[2,1,32], index: 13, kind: input, shape index: {}]
  %s14 = inlined_call_operand.vmem [shape: f32[2,1,32], index: 14, kind: input, shape index: {}]
  %s15 = inlined_call_operand.vmem [shape: f32[2,1,32], index: 15, kind: input, shape index: {}]
  %s16 = inlined_call_operand.vmem [shape: bf16[32,32], index: 16, kind: input, shape index: {}]
  %s17 = inlined_call_operand.vmem [shape: f32[1,32], index: 17, kind: input, shape index: {}]
  %s18 = inlined_call_operand.vmem [shape: bf16[32,3], index: 18, kind: input, shape index: {}]
  %s19 = inlined_call_operand.vmem [shape: f32[1,3], index: 19, kind: input, shape index: {}]
  %s20 = inlined_call_operand.hbm [shape: f32[2,1,3], index: 20, kind: output, shape index: {}]
  %s21 = sld [smem:[#allocation0]]
  $region113: #{roberta_classifier_forward.1} parent=0
    _
  %s23 = ssub.s32 1, %s21
  %s24 = scalar_select 0, %s23, %s21
  $region1: #{roberta_classifier_forward.1} parent=0
    #allocation3 [shape = 'u8[1024]{0}', space=vmem, size = 0x400, scoped, tag = 'output window, operand 0']
    #allocation4 [shape = 's32[2]{0}', space=sflag, size = 0x8, scoped, tag = 'scoped memory for roberta_classifier_forward.1']
    %25 = vsyncpa [#allocation4], 0
    %s26 = scalar_lea.sflag [#allocation4], 1
    %27 = vsyncpa %s26, 0
    loop: start=0, step=1, limit=4
    $region2: #{roberta_classifier_forward.1} parent=1 // loop_pre_header
      _
    $region3: #{roberta_classifier_forward.1} parent=1 // loop_header
      %s29 = sphi 0, %s33
      %p30 = scmp.ge.s32.totalorder %s29, 4
      %s39 = sphi 0, %s41
      %s42 = sphi 0, %s39
      %s43 = sphi 0, %s42
      %s59 = sphi 0, %s43
      %s65 = sphi 0, %s67
      %s68 = sphi 0, %s65
      %s69 = sphi 0, %s68
      %s85 = sphi 0, %s69
      %s89 = sphi 0, %s89
      %s91 = sphi 0, %s89
      %s92 = sphi 0, %s91
      %s106 = sphi 0, %s92
      %s110 = sphi 0, %s110
      %s112 = sphi 0, %s110
      %s113 = sphi 0, %s112
      %s127 = sphi 0, %s113
      %s131 = sphi 0, %s131
      %s133 = sphi 0, %s131
      %s134 = sphi 0, %s133
      %s148 = sphi 0, %s134
      %s152 = sphi 0, %s152
      %s154 = sphi 0, %s152
      %s155 = sphi 0, %s154
      %s169 = sphi 0, %s155
      %s173 = sphi 0, %s173
      %s175 = sphi 0, %s173
      %s176 = sphi 0, %s175
      %s190 = sphi 0, %s176
      %s194 = sphi 0, %s194
      %s196 = sphi 0, %s194
      %s197 = sphi 0, %s196
      %s211 = sphi 0, %s197
      %s215 = sphi 0, %s215
      %s217 = sphi 0, %s215
      %s218 = sphi 0, %s217
      %s232 = sphi 0, %s218
      %s236 = sphi 0, %s236
      %s238 = sphi 0, %s236
      %s239 = sphi 0, %s238
      %s253 = sphi 0, %s239
      %s257 = sphi 0, %s257
      %s259 = sphi 0, %s257
      %s260 = sphi 0, %s259
      %s274 = sphi 0, %s260
      %s278 = sphi 0, %s278
      %s280 = sphi 0, %s278
      %s281 = sphi 0, %s280
      %s295 = sphi 0, %s281
      %s299 = sphi 0, %s299
      %s301 = sphi 0, %s299
      %s302 = sphi 0, %s301
      %s316 = sphi 0, %s302
      %s320 = sphi 0, %s320
      %s322 = sphi 0, %s320
      %s323 = sphi 0, %s322
      %s337 = sphi 0, %s323
      %s341 = sphi 0, %s341
      %s343 = sphi 0, %s341
      %s344 = sphi 0, %s343
      %s358 = sphi 0, %s344
      %s362 = sphi 0, %s362
      %s364 = sphi 0, %s362
      %s365 = sphi 0, %s364
      %s379 = sphi 0, %s365
      %s383 = sphi 0, %s383
      %s385 = sphi 0, %s383
      %s386 = sphi 0, %s385
      %s400 = sphi 0, %s386
      %s404 = sphi 0, %s404
      %s406 = sphi 0, %s404
      %s407 = sphi 0, %s406
      %s421 = sphi 0, %s407
      %s425 = sphi 0, %s425
      %s427 = sphi 0, %s425
      %s428 = sphi 0, %s427
      %s442 = sphi 0, %s428
      %s446 = sphi 0, %s446
      %s448 = sphi 0, %s446
      %s449 = sphi 0, %s448
      %s463 = sphi 0, %s449
      %s469 = sphi 0, %s471
      %s472 = sphi 0, %s469
      %s473 = sphi 0, %s472
      %s489 = sphi 0, %s473
    $region4: #{roberta_classifier_forward.1} parent=1 // loop_header_branch
      %32 = sbr.rel (%p30) target = $region8
    $region5: #{roberta_classifier_forward.1} parent=1 // loop_body
      %s34 = ssub.s32 %s29, 1
      %s35 = ssub.s32 %s29, 2
      %s36 = sadd.s32 %s29, 1
      %s37 = ssub.s32 %s29, %s36
      %p38 = scmp.eq.s32.totalorder %s37, 0
      %s40 = sadd.s32 %s39, 1
      %s41 = scalar_select %p38, %s39, %s40
      %p44 = pneg %p38
      %p45 = scmp.eq.s32.totalorder %s29, 1
      %p46 = por %p44, %p45
      %p47 = scmp.ne.s32.totalorder %s39, %s42
      %p48 = scmp.eq.s32.totalorder %s29, 0
      %p49 = por %p47, %p48
      %p50 = scmp.ne.s32.totalorder %s39, %s42
      %p51 = scmp.eq.s32.totalorder %s34, 1
      %p52 = por %p50, %p51
      %p53 = scmp.ne.s32.totalorder %s42, %s43
      %p54 = scmp.eq.s32.totalorder %s34, 0
      %p55 = por %p53, %p54
      %p56 = scmp.ne.s32.totalorder %s42, %s43
      %p57 = scmp.eq.s32.totalorder %s35, 1
      %p58 = por %p56, %p57
      %p60 = scmp.ne.s32.totalorder %s43, %s59
      %p61 = scmp.eq.s32.totalorder %s35, 0
      %p62 = por %p60, %p61
      %s63 = ssub.s32 %s29, %s36
      %p64 = scmp.eq.s32.totalorder %s63, 0
      %s66 = sadd.s32 %s65, 1
      %s67 = scalar_select %p64, %s65, %s66
      %p70 = pneg %p64
      %p71 = scmp.eq.s32.totalorder %s29, 1
      %p72 = por %p70, %p71
      %p73 = scmp.ne.s32.totalorder %s65, %s68
      %p74 = scmp.eq.s32.totalorder %s29, 0
      %p75 = por %p73, %p74
      %p76 = scmp.ne.s32.totalorder %s65, %s68
      %p77 = scmp.eq.s32.totalorder %s34, 1
      %p78 = por %p76, %p77
      %p79 = scmp.ne.s32.totalorder %s68, %s69
      %p80 = scmp.eq.s32.totalorder %s34, 0
      %p81 = por %p79, %p80
      %p82 = scmp.ne.s32.totalorder %s68, %s69
      %p83 = scmp.eq.s32.totalorder %s35, 1
      %p84 = por %p82, %p83
      %p86 = scmp.ne.s32.totalorder %s69, %s85
      %p87 = scmp.eq.s32.totalorder %s35, 0
      %p88 = por %p86, %p87
      %s90 = sadd.s32 %s89, 1
      %p93 = scmp.eq.s32.totalorder %s29, 1
      %p94 = scmp.ne.s32.totalorder %s89, %s91
      %p95 = scmp.eq.s32.totalorder %s29, 0
      %p96 = por %p94, %p95
      %p97 = scmp.ne.s32.totalorder %s89, %s91
      %p98 = scmp.eq.s32.totalorder %s34, 1
      %p99 = por %p97, %p98
      %p100 = scmp.ne.s32.totalorder %s91, %s92
      %p101 = scmp.eq.s32.totalorder %s34, 0
      %p102 = por %p100, %p101
      %p103 = scmp.ne.s32.totalorder %s91, %s92
      %p104 = scmp.eq.s32.totalorder %s35, 1
      %p105 = por %p103, %p104
      %p107 = scmp.ne.s32.totalorder %s92, %s106
      %p108 = scmp.eq.s32.totalorder %s35, 0
      %p109 = por %p107, %p108
      %s111 = sadd.s32 %s110, 1
      %p114 = scmp.eq.s32.totalorder %s29, 1
      %p115 = scmp.ne.s32.totalorder %s110, %s112
      %p116 = scmp.eq.s32.totalorder %s29, 0
      %p117 = por %p115, %p116
      %p118 = scmp.ne.s32.totalorder %s110, %s112
      %p119 = scmp.eq.s32.totalorder %s34, 1
      %p120 = por %p118, %p119
      %p121 = scmp.ne.s32.totalorder %s112, %s113
      %p122 = scmp.eq.s32.totalorder %s34, 0
      %p123 = por %p121, %p122
      %p124 = scmp.ne.s32.totalorder %s112, %s113
      %p125 = scmp.eq.s32.totalorder %s35, 1
      %p126 = por %p124, %p125
      %p128 = scmp.ne.s32.totalorder %s113, %s127
      %p129 = scmp.eq.s32.totalorder %s35, 0
      %p130 = por %p128, %p129
      %s132 = sadd.s32 %s131, 1
      %p135 = scmp.eq.s32.totalorder %s29, 1
      %p136 = scmp.ne.s32.totalorder %s131, %s133
      %p137 = scmp.eq.s32.totalorder %s29, 0
      %p138 = por %p136, %p137
      %p139 = scmp.ne.s32.totalorder %s131, %s133
      %p140 = scmp.eq.s32.totalorder %s34, 1
      %p141 = por %p139, %p140
      %p142 = scmp.ne.s32.totalorder %s133, %s134
      %p143 = scmp.eq.s32.totalorder %s34, 0
      %p144 = por %p142, %p143
      %p145 = scmp.ne.s32.totalorder %s133, %s134
      %p146 = scmp.eq.s32.totalorder %s35, 1
      %p147 = por %p145, %p146
      %p149 = scmp.ne.s32.totalorder %s134, %s148
      %p150 = scmp.eq.s32.totalorder %s35, 0
      %p151 = por %p149, %p150
      %s153 = sadd.s32 %s152, 1
      %p156 = scmp.eq.s32.totalorder %s29, 1
      %p157 = scmp.ne.s32.totalorder %s152, %s154
      %p158 = scmp.eq.s32.totalorder %s29, 0
      %p159 = por %p157, %p158
      %p160 = scmp.ne.s32.totalorder %s152, %s154
      %p161 = scmp.eq.s32.totalorder %s34, 1
      %p162 = por %p160, %p161
      %p163 = scmp.ne.s32.totalorder %s154, %s155
      %p164 = scmp.eq.s32.totalorder %s34, 0
      %p165 = por %p163, %p164
      %p166 = scmp.ne.s32.totalorder %s154, %s155
      %p167 = scmp.eq.s32.totalorder %s35, 1
      %p168 = por %p166, %p167
      %p170 = scmp.ne.s32.totalorder %s155, %s169
      %p171 = scmp.eq.s32.totalorder %s35, 0
      %p172 = por %p170, %p171
      %s174 = sadd.s32 %s173, 1
      %p177 = scmp.eq.s32.totalorder %s29, 1
      %p178 = scmp.ne.s32.totalorder %s173, %s175
      %p179 = scmp.eq.s32.totalorder %s29, 0
      %p180 = por %p178, %p179
      %p181 = scmp.ne.s32.totalorder %s173, %s175
      %p182 = scmp.eq.s32.totalorder %s34, 1
      %p183 = por %p181, %p182
      %p184 = scmp.ne.s32.totalorder %s175, %s176
      %p185 = scmp.eq.s32.totalorder %s34, 0
      %p186 = por %p184, %p185
      %p187 = scmp.ne.s32.totalorder %s175, %s176
      %p188 = scmp.eq.s32.totalorder %s35, 1
      %p189 = por %p187, %p188
      %p191 = scmp.ne.s32.totalorder %s176, %s190
      %p192 = scmp.eq.s32.totalorder %s35, 0
      %p193 = por %p191, %p192
      %s195 = sadd.s32 %s194, 1
      %p198 = scmp.eq.s32.totalorder %s29, 1
      %p199 = scmp.ne.s32.totalorder %s194, %s196
      %p200 = scmp.eq.s32.totalorder %s29, 0
      %p201 = por %p199, %p200
      %p202 = scmp.ne.s32.totalorder %s194, %s196
      %p203 = scmp.eq.s32.totalorder %s34, 1
      %p204 = por %p202, %p203
      %p205 = scmp.ne.s32.totalorder %s196, %s197
      %p206 = scmp.eq.s32.totalorder %s34, 0
      %p207 = por %p205, %p206
      %p208 = scmp.ne.s32.totalorder %s196, %s197
      %p209 = scmp.eq.s32.totalorder %s35, 1
      %p210 = por %p208, %p209
      %p212 = scmp.ne.s32.totalorder %s197, %s211
      %p213 = scmp.eq.s32.totalorder %s35, 0
      %p214 = por %p212, %p213
      %s216 = sadd.s32 %s215, 1
      %p219 = scmp.eq.s32.totalorder %s29, 1
      %p220 = scmp.ne.s32.totalorder %s215, %s217
      %p221 = scmp.eq.s32.totalorder %s29, 0
      %p222 = por %p220, %p221
      %p223 = scmp.ne.s32.totalorder %s215, %s217
      %p224 = scmp.eq.s32.totalorder %s34, 1
      %p225 = por %p223, %p224
      %p226 = scmp.ne.s32.totalorder %s217, %s218
      %p227 = scmp.eq.s32.totalorder %s34, 0
      %p228 = por %p226, %p227
      %p229 = scmp.ne.s32.totalorder %s217, %s218
      %p230 = scmp.eq.s32.totalorder %s35, 1
      %p231 = por %p229, %p230
      %p233 = scmp.ne.s32.totalorder %s218, %s232
      %p234 = scmp.eq.s32.totalorder %s35, 0
      %p235 = por %p233, %p234
      %s237 = sadd.s32 %s236, 1
      %p240 = scmp.eq.s32.totalorder %s29, 1
      %p241 = scmp.ne.s32.totalorder %s236, %s238
      %p242 = scmp.eq.s32.totalorder %s29, 0
      %p243 = por %p241, %p242
      %p244 = scmp.ne.s32.totalorder %s236, %s238
      %p245 = scmp.eq.s32.totalorder %s34, 1
      %p246 = por %p244, %p245
      %p247 = scmp.ne.s32.totalorder %s238, %s239
      %p248 = scmp.eq.s32.totalorder %s34, 0
      %p249 = por %p247, %p248
      %p250 = scmp.ne.s32.totalorder %s238, %s239
      %p251 = scmp.eq.s32.totalorder %s35, 1
      %p252 = por %p250, %p251
      %p254 = scmp.ne.s32.totalorder %s239, %s253
      %p255 = scmp.eq.s32.totalorder %s35, 0
      %p256 = por %p254, %p255
      %s258 = sadd.s32 %s257, 1
      %p261 = scmp.eq.s32.totalorder %s29, 1
      %p262 = scmp.ne.s32.totalorder %s257, %s259
      %p263 = scmp.eq.s32.totalorder %s29, 0
      %p264 = por %p262, %p263
      %p265 = scmp.ne.s32.totalorder %s257, %s259
      %p266 = scmp.eq.s32.totalorder %s34, 1
      %p267 = por %p265, %p266
      %p268 = scmp.ne.s32.totalorder %s259, %s260
      %p269 = scmp.eq.s32.totalorder %s34, 0
      %p270 = por %p268, %p269
      %p271 = scmp.ne.s32.totalorder %s259, %s260
      %p272 = scmp.eq.s32.totalorder %s35, 1
      %p273 = por %p271, %p272
      %p275 = scmp.ne.s32.totalorder %s260, %s274
      %p276 = scmp.eq.s32.totalorder %s35, 0
      %p277 = por %p275, %p276
      %s279 = sadd.s32 %s278, 1
      %p282 = scmp.eq.s32.totalorder %s29, 1
      %p283 = scmp.ne.s32.totalorder %s278, %s280
      %p284 = scmp.eq.s32.totalorder %s29, 0
      %p285 = por %p283, %p284
      %p286 = scmp.ne.s32.totalorder %s278, %s280
      %p287 = scmp.eq.s32.totalorder %s34, 1
      %p288 = por %p286, %p287
      %p289 = scmp.ne.s32.totalorder %s280, %s281
      %p290 = scmp.eq.s32.totalorder %s34, 0
      %p291 = por %p289, %p290
      %p292 = scmp.ne.s32.totalorder %s280, %s281
      %p293 = scmp.eq.s32.totalorder %s35, 1
      %p294 = por %p292, %p293
      %p296 = scmp.ne.s32.totalorder %s281, %s295
      %p297 = scmp.eq.s32.totalorder %s35, 0
      %p298 = por %p296, %p297
      %s300 = sadd.s32 %s299, 1
      %p303 = scmp.eq.s32.totalorder %s29, 1
      %p304 = scmp.ne.s32.totalorder %s299, %s301
      %p305 = scmp.eq.s32.totalorder %s29, 0
      %p306 = por %p304, %p305
      %p307 = scmp.ne.s32.totalorder %s299, %s301
      %p308 = scmp.eq.s32.totalorder %s34, 1
      %p309 = por %p307, %p308
      %p310 = scmp.ne.s32.totalorder %s301, %s302
      %p311 = scmp.eq.s32.totalorder %s34, 0
      %p312 = por %p310, %p311
      %p313 = scmp.ne.s32.totalorder %s301, %s302
      %p314 = scmp.eq.s32.totalorder %s35, 1
      %p315 = por %p313, %p314
      %p317 = scmp.ne.s32.totalorder %s302, %s316
      %p318 = scmp.eq.s32.totalorder %s35, 0
      %p319 = por %p317, %p318
      %s321 = sadd.s32 %s320, 1
      %p324 = scmp.eq.s32.totalorder %s29, 1
      %p325 = scmp.ne.s32.totalorder %s320, %s322
      %p326 = scmp.eq.s32.totalorder %s29, 0
      %p327 = por %p325, %p326
      %p328 = scmp.ne.s32.totalorder %s320, %s322
      %p329 = scmp.eq.s32.totalorder %s34, 1
      %p330 = por %p328, %p329
      %p331 = scmp.ne.s32.totalorder %s322, %s323
      %p332 = scmp.eq.s32.totalorder %s34, 0
      %p333 = por %p331, %p332
      %p334 = scmp.ne.s32.totalorder %s322, %s323
      %p335 = scmp.eq.s32.totalorder %s35, 1
      %p336 = por %p334, %p335
      %p338 = scmp.ne.s32.totalorder %s323, %s337
      %p339 = scmp.eq.s32.totalorder %s35, 0
      %p340 = por %p338, %p339
      %s342 = sadd.s32 %s341, 1
      %p345 = scmp.eq.s32.totalorder %s29, 1
      %p346 = scmp.ne.s32.totalorder %s341, %s343
      %p347 = scmp.eq.s32.totalorder %s29, 0
      %p348 = por %p346, %p347
      %p349 = scmp.ne.s32.totalorder %s341, %s343
      %p350 = scmp.eq.s32.totalorder %s34, 1
      %p351 = por %p349, %p350
      %p352 = scmp.ne.s32.totalorder %s343, %s344
      %p353 = scmp.eq.s32.totalorder %s34, 0
      %p354 = por %p352, %p353
      %p355 = scmp.ne.s32.totalorder %s343, %s344
      %p356 = scmp.eq.s32.totalorder %s35, 1
      %p357 = por %p355, %p356
      %p359 = scmp.ne.s32.totalorder %s344, %s358
      %p360 = scmp.eq.s32.totalorder %s35, 0
      %p361 = por %p359, %p360
      %s363 = sadd.s32 %s362, 1
      %p366 = scmp.eq.s32.totalorder %s29, 1
      %p367 = scmp.ne.s32.totalorder %s362, %s364
      %p368 = scmp.eq.s32.totalorder %s29, 0
      %p369 = por %p367, %p368
      %p370 = scmp.ne.s32.totalorder %s362, %s364
      %p371 = scmp.eq.s32.totalorder %s34, 1
      %p372 = por %p370, %p371
      %p373 = scmp.ne.s32.totalorder %s364, %s365
      %p374 = scmp.eq.s32.totalorder %s34, 0
      %p375 = por %p373, %p374
      %p376 = scmp.ne.s32.totalorder %s364, %s365
      %p377 = scmp.eq.s32.totalorder %s35, 1
      %p378 = por %p376, %p377
      %p380 = scmp.ne.s32.totalorder %s365, %s379
      %p381 = scmp.eq.s32.totalorder %s35, 0
      %p382 = por %p380, %p381
      %s384 = sadd.s32 %s383, 1
      %p387 = scmp.eq.s32.totalorder %s29, 1
      %p388 = scmp.ne.s32.totalorder %s383, %s385
      %p389 = scmp.eq.s32.totalorder %s29, 0
      %p390 = por %p388, %p389
      %p391 = scmp.ne.s32.totalorder %s383, %s385
      %p392 = scmp.eq.s32.totalorder %s34, 1
      %p393 = por %p391, %p392
      %p394 = scmp.ne.s32.totalorder %s385, %s386
      %p395 = scmp.eq.s32.totalorder %s34, 0
      %p396 = por %p394, %p395
      %p397 = scmp.ne.s32.totalorder %s385, %s386
      %p398 = scmp.eq.s32.totalorder %s35, 1
      %p399 = por %p397, %p398
      %p401 = scmp.ne.s32.totalorder %s386, %s400
      %p402 = scmp.eq.s32.totalorder %s35, 0
      %p403 = por %p401, %p402
      %s405 = sadd.s32 %s404, 1
      %p408 = scmp.eq.s32.totalorder %s29, 1
      %p409 = scmp.ne.s32.totalorder %s404, %s406
      %p410 = scmp.eq.s32.totalorder %s29, 0
      %p411 = por %p409, %p410
      %p412 = scmp.ne.s32.totalorder %s404, %s406
      %p413 = scmp.eq.s32.totalorder %s34, 1
      %p414 = por %p412, %p413
      %p415 = scmp.ne.s32.totalorder %s406, %s407
      %p416 = scmp.eq.s32.totalorder %s34, 0
      %p417 = por %p415, %p416
      %p418 = scmp.ne.s32.totalorder %s406, %s407
      %p419 = scmp.eq.s32.totalorder %s35, 1
      %p420 = por %p418, %p419
      %p422 = scmp.ne.s32.totalorder %s407, %s421
      %p423 = scmp.eq.s32.totalorder %s35, 0
      %p424 = por %p422, %p423
      %s426 = sadd.s32 %s425, 1
      %p429 = scmp.eq.s32.totalorder %s29, 1
      %p430 = scmp.ne.s32.totalorder %s425, %s427
      %p431 = scmp.eq.s32.totalorder %s29, 0
      %p432 = por %p430, %p431
      %p433 = scmp.ne.s32.totalorder %s425, %s427
      %p434 = scmp.eq.s32.totalorder %s34, 1
      %p435 = por %p433, %p434
      %p436 = scmp.ne.s32.totalorder %s427, %s428
      %p437 = scmp.eq.s32.totalorder %s34, 0
      %p438 = por %p436, %p437
      %p439 = scmp.ne.s32.totalorder %s427, %s428
      %p440 = scmp.eq.s32.totalorder %s35, 1
      %p441 = por %p439, %p440
      %p443 = scmp.ne.s32.totalorder %s428, %s442
      %p444 = scmp.eq.s32.totalorder %s35, 0
      %p445 = por %p443, %p444
      %s447 = sadd.s32 %s446, 1
      %p450 = scmp.eq.s32.totalorder %s29, 1
      %p451 = scmp.ne.s32.totalorder %s446, %s448
      %p452 = scmp.eq.s32.totalorder %s29, 0
      %p453 = por %p451, %p452
      %p454 = scmp.ne.s32.totalorder %s446, %s448
      %p455 = scmp.eq.s32.totalorder %s34, 1
      %p456 = por %p454, %p455
      %p457 = scmp.ne.s32.totalorder %s448, %s449
      %p458 = scmp.eq.s32.totalorder %s34, 0
      %p459 = por %p457, %p458
      %p460 = scmp.ne.s32.totalorder %s448, %s449
      %p461 = scmp.eq.s32.totalorder %s35, 1
      %p462 = por %p460, %p461
      %p464 = scmp.ne.s32.totalorder %s449, %s463
      %p465 = scmp.eq.s32.totalorder %s35, 0
      %p466 = por %p464, %p465
      %s467 = ssub.s32 %s29, %s36
      %p468 = scmp.eq.s32.totalorder %s467, 0
      %s470 = sadd.s32 %s469, 1
      %s471 = scalar_select %p468, %s469, %s470
      %p474 = pneg %p468
      %p475 = scmp.eq.s32.totalorder %s29, 1
      %p476 = por %p474, %p475
      %p477 = scmp.ne.s32.totalorder %s469, %s472
      %p478 = scmp.eq.s32.totalorder %s29, 0
      %p479 = por %p477, %p478
      %p480 = scmp.ne.s32.totalorder %s469, %s472
      %p481 = scmp.eq.s32.totalorder %s34, 1
      %p482 = por %p480, %p481
      %p483 = scmp.ne.s32.totalorder %s472, %s473
      %p484 = scmp.eq.s32.totalorder %s34, 0
      %p485 = por %p483, %p484
      %p486 = scmp.ne.s32.totalorder %s472, %s473
      %p487 = scmp.eq.s32.totalorder %s35, 1
      %p488 = por %p486, %p487
      %p490 = scmp.ne.s32.totalorder %s473, %s489
      %p491 = scmp.eq.s32.totalorder %s35, 0
      %p492 = por %p490, %p491
      %p493 = scmp.le.s32.totalorder 1, %s29
      %p494 = scmp.lt.s32.totalorder %s29, 3
      %p495 = pnand %p493, %p494
      %p496 = pneg %p495
      // Predicated region
      $region9: #{roberta_classifier_forward.1} parent=5 // pred_check
        _
      $region10: #{roberta_classifier_forward.1} parent=5 // pred_check_branch
        %498 = sbr.rel (%p495) target = $region12
      $region11: #{roberta_classifier_forward.1} parent=5 // pred_region
        %s499 = ssub.s32 %s29, 1
        // Predicated region
        $region13: #{roberta_classifier_forward.1} parent=11 // pred_check
          %p500 = pneg %p102
        $region14: #{roberta_classifier_forward.1} parent=11 // pred_check_branch
          %502 = sbr.rel (%p500) target = $region16
        $region15: #{roberta_classifier_forward.1} parent=11 // pred_region
          _
        $region16: #{roberta_classifier_forward.1} parent=11 // pred_fallthru
          _
        // Predicated region
        $region17: #{roberta_classifier_forward.1} parent=11 // pred_check
          %p503 = pneg %p123
        $region18: #{roberta_classifier_forward.1} parent=11 // pred_check_branch
          %505 = sbr.rel (%p503) target = $region20
        $region19: #{roberta_classifier_forward.1} parent=11 // pred_region
          _
        $region20: #{roberta_classifier_forward.1} parent=11 // pred_fallthru
          _
        // Predicated region
        $region21: #{roberta_classifier_forward.1} parent=11 // pred_check
          %p506 = pneg %p144
        $region22: #{roberta_classifier_forward.1} parent=11 // pred_check_branch
          %508 = sbr.rel (%p506) target = $region24
        $region23: #{roberta_classifier_forward.1} parent=11 // pred_region
          _
        $region24: #{roberta_classifier_forward.1} parent=11 // pred_fallthru
          _
        // Predicated region
        $region25: #{roberta_classifier_forward.1} parent=11 // pred_check
          %p509 = pneg %p165
        $region26: #{roberta_classifier_forward.1} parent=11 // pred_check_branch
          %511 = sbr.rel (%p509) target = $region28
        $region27: #{roberta_classifier_forward.1} parent=11 // pred_region
          _
        $region28: #{roberta_classifier_forward.1} parent=11 // pred_fallthru
          _
        // Predicated region
        $region29: #{roberta_classifier_forward.1} parent=11 // pred_check
          %p512 = pneg %p186
        $region30: #{roberta_classifier_forward.1} parent=11 // pred_check_branch
          %514 = sbr.rel (%p512) target = $region32
        $region31: #{roberta_classifier_forward.1} parent=11 // pred_region
          _
        $region32: #{roberta_classifier_forward.1} parent=11 // pred_fallthru
          _
        // Predicated region
        $region33: #{roberta_classifier_forward.1} parent=11 // pred_check
          %p515 = pneg %p207
        $region34: #{roberta_classifier_forward.1} parent=11 // pred_check_branch
          %517 = sbr.rel (%p515) target = $region36
        $region35: #{roberta_classifier_forward.1} parent=11 // pred_region
          _
        $region36: #{roberta_classifier_forward.1} parent=11 // pred_fallthru
          _
        // Predicated region
        $region37: #{roberta_classifier_forward.1} parent=11 // pred_check
          %p518 = pneg %p228
        $region38: #{roberta_classifier_forward.1} parent=11 // pred_check_branch
          %520 = sbr.rel (%p518) target = $region40
        $region39: #{roberta_classifier_forward.1} parent=11 // pred_region
          _
        $region40: #{roberta_classifier_forward.1} parent=11 // pred_fallthru
          _
        // Predicated region
        $region41: #{roberta_classifier_forward.1} parent=11 // pred_check
          %p521 = pneg %p249
        $region42: #{roberta_classifier_forward.1} parent=11 // pred_check_branch
          %523 = sbr.rel (%p521) target = $region44
        $region43: #{roberta_classifier_forward.1} parent=11 // pred_region
          _
        $region44: #{roberta_classifier_forward.1} parent=11 // pred_fallthru
          _
        // Predicated region
        $region45: #{roberta_classifier_forward.1} parent=11 // pred_check
          %p524 = pneg %p270
        $region46: #{roberta_classifier_forward.1} parent=11 // pred_check_branch
          %526 = sbr.rel (%p524) target = $region48
        $region47: #{roberta_classifier_forward.1} parent=11 // pred_region
          _
        $region48: #{roberta_classifier_forward.1} parent=11 // pred_fallthru
          _
        // Predicated region
        $region49: #{roberta_classifier_forward.1} parent=11 // pred_check
          %p527 = pneg %p291
        $region50: #{roberta_classifier_forward.1} parent=11 // pred_check_branch
          %529 = sbr.rel (%p527) target = $region52
        $region51: #{roberta_classifier_forward.1} parent=11 // pred_region
          _
        $region52: #{roberta_classifier_forward.1} parent=11 // pred_fallthru
          _
        // Predicated region
        $region53: #{roberta_classifier_forward.1} parent=11 // pred_check
          %p530 = pneg %p312
        $region54: #{roberta_classifier_forward.1} parent=11 // pred_check_branch
          %532 = sbr.rel (%p530) target = $region56
        $region55: #{roberta_classifier_forward.1} parent=11 // pred_region
          _
        $region56: #{roberta_classifier_forward.1} parent=11 // pred_fallthru
          _
        // Predicated region
        $region57: #{roberta_classifier_forward.1} parent=11 // pred_check
          %p533 = pneg %p333
        $region58: #{roberta_classifier_forward.1} parent=11 // pred_check_branch
          %535 = sbr.rel (%p533) target = $region60
        $region59: #{roberta_classifier_forward.1} parent=11 // pred_region
          _
        $region60: #{roberta_classifier_forward.1} parent=11 // pred_fallthru
          _
        // Predicated region
        $region61: #{roberta_classifier_forward.1} parent=11 // pred_check
          %p536 = pneg %p354
        $region62: #{roberta_classifier_forward.1} parent=11 // pred_check_branch
          %538 = sbr.rel (%p536) target = $region64
        $region63: #{roberta_classifier_forward.1} parent=11 // pred_region
          _
        $region64: #{roberta_classifier_forward.1} parent=11 // pred_fallthru
          _
        // Predicated region
        $region65: #{roberta_classifier_forward.1} parent=11 // pred_check
          %p539 = pneg %p375
        $region66: #{roberta_classifier_forward.1} parent=11 // pred_check_branch
          %541 = sbr.rel (%p539) target = $region68
        $region67: #{roberta_classifier_forward.1} parent=11 // pred_region
          _
        $region68: #{roberta_classifier_forward.1} parent=11 // pred_fallthru
          _
        // Predicated region
        $region69: #{roberta_classifier_forward.1} parent=11 // pred_check
          %p542 = pneg %p396
        $region70: #{roberta_classifier_forward.1} parent=11 // pred_check_branch
          %544 = sbr.rel (%p542) target = $region72
        $region71: #{roberta_classifier_forward.1} parent=11 // pred_region
          _
        $region72: #{roberta_classifier_forward.1} parent=11 // pred_fallthru
          _
        // Predicated region
        $region73: #{roberta_classifier_forward.1} parent=11 // pred_check
          %p545 = pneg %p417
        $region74: #{roberta_classifier_forward.1} parent=11 // pred_check_branch
          %547 = sbr.rel (%p545) target = $region76
        $region75: #{roberta_classifier_forward.1} parent=11 // pred_region
          _
        $region76: #{roberta_classifier_forward.1} parent=11 // pred_fallthru
          _
        // Predicated region
        $region77: #{roberta_classifier_forward.1} parent=11 // pred_check
          %p548 = pneg %p438
        $region78: #{roberta_classifier_forward.1} parent=11 // pred_check_branch
          %550 = sbr.rel (%p548) target = $region80
        $region79: #{roberta_classifier_forward.1} parent=11 // pred_region
          _
        $region80: #{roberta_classifier_forward.1} parent=11 // pred_fallthru
          _
        // Predicated region
        $region81: #{roberta_classifier_forward.1} parent=11 // pred_check
          %p551 = pneg %p459
        $region82: #{roberta_classifier_forward.1} parent=11 // pred_check_branch
          %553 = sbr.rel (%p551) target = $region84
        $region83: #{roberta_classifier_forward.1} parent=11 // pred_region
          _
        $region84: #{roberta_classifier_forward.1} parent=11 // pred_fallthru
          _
      $region12: #{roberta_classifier_forward.1} parent=5 // pred_fallthru
        _
      %p554 = scmp.lt.s32.totalorder %s29, 2
      // Predicated region
      $region85: #{roberta_classifier_forward.1} parent=5 // pred_check
        %p555 = pneg %p554
      $region86: #{roberta_classifier_forward.1} parent=5 // pred_check_branch
        %557 = sbr.rel (%p555) target = $region88
      $region87: #{roberta_classifier_forward.1} parent=5 // pred_region
        // Predicated region
        $region89: #{roberta_classifier_forward.1} parent=87 // pred_check
          %p558 = pneg %p49
        $region90: #{roberta_classifier_forward.1} parent=87 // pred_check_branch
          %560 = sbr.rel (%p558) target = $region92
        $region91: #{roberta_classifier_forward.1} parent=87 // pred_region
          %p561 = scmp.lt.s32.totalorder %s29, 1
          %s562 = scalar_select %p561, %s29, 1
          %s563 = smul.addr %s562, 8
          %s564 = scalar_lea.vmem %s0, %s563
        $region92: #{roberta_classifier_forward.1} parent=87 // pred_fallthru
          _
        // Predicated region
        $region93: #{roberta_classifier_forward.1} parent=87 // pred_check
          %p565 = pneg %p75
        $region94: #{roberta_classifier_forward.1} parent=87 // pred_check_branch
          %567 = sbr.rel (%p565) target = $region96
        $region95: #{roberta_classifier_forward.1} parent=87 // pred_region
          %p568 = scmp.lt.s32.totalorder %s29, 1
          %s569 = scalar_select %p568, %s29, 1
          %s570 = scalar_lea.vmem %s1, %s569
        $region96: #{roberta_classifier_forward.1} parent=87 // pred_fallthru
          _
      $region88: #{roberta_classifier_forward.1} parent=5 // pred_fallthru
        _
      %p571 = scmp.le.s32.totalorder 1, %s29
      %p572 = scmp.lt.s32.totalorder %s29, 3
      %p573 = pnand %p571, %p572
      %p574 = pneg %p573
      // Predicated region
      $region97: #{roberta_classifier_forward.1} parent=5 // pred_check
        _
      $region98: #{roberta_classifier_forward.1} parent=5 // pred_check_branch
        %576 = sbr.rel (%p573) target = $region100
      $region99: #{roberta_classifier_forward.1} parent=5 // pred_region
        %s577 = ssub.s32 %s29, 1
        %p578 = scmp.lt.s32.totalorder %s34, 1
        %s579 = scalar_select %p578, %s34, 1
        %s580 = smul.addr %s579, 8
        %s581 = scalar_lea.vmem %s0, %s580
        %p582 = pneg %p55
        %p583 = pneg %p52
        %p584 = scmp.lt.s32.totalorder %s34, 1
        %s585 = scalar_select %p584, %s34, 1
        %s586 = scalar_lea.vmem %s1, %s585
        %p587 = pneg %p81
        %p588 = pneg %p78
        %p589 = pneg %p102
        %p590 = pneg %p99
        %p591 = pneg %p123
        %p592 = pneg %p120
        %p593 = pneg %p144
        %p594 = pneg %p141
        %p595 = pneg %p165
        %p596 = pneg %p162
        %p597 = pneg %p186
        %p598 = pneg %p183
        %p599 = pneg %p207
        %p600 = pneg %p204
        %p601 = pneg %p228
        %p602 = pneg %p225
        %p603 = pneg %p249
        %p604 = pneg %p246
        %p605 = pneg %p270
        %p606 = pneg %p267
        %p607 = pneg %p291
        %p608 = pneg %p288
        %p609 = pneg %p312
        %p610 = pneg %p309
        %p611 = pneg %p333
        %p612 = pneg %p330
        %p613 = pneg %p354
        %p614 = pneg %p351
        %p615 = pneg %p375
        %p616 = pneg %p372
        %p617 = pneg %p396
        %p618 = pneg %p393
        %p619 = pneg %p417
        %p620 = pneg %p414
        %p621 = pneg %p438
        %p622 = pneg %p435
        %p623 = pneg %p459
        %p624 = pneg %p456
        %p625 = pneg %p485
        %p626 = pneg %p482
        %s627 = sand.u32 %s472, 1
        %s628 = scalar_lea.sflag [#allocation4], %s627
        %s629 = sand.u32 %s472, 1
        %s630 = scalar_lea.vmem [#allocation3], %s629
        %p631 = scmp.lt.s32.totalorder %s34, 1
        %s632 = scalar_select %p631, %s34, 1
        %s633 = smul.addr %s632, 8
        %s634 = scalar_lea.vmem %s0, %s633
        %p635 = scmp.lt.s32.totalorder %s34, 1
        %s636 = scalar_select %p635, %s34, 1
        %s637 = scalar_lea.vmem %s1, %s636
        %v639 = vld [vmem:[%s634] sm:$0xff]
        %v640 = vld [vmem:[%s2] sm:$0x1]
        %v641 = vld [vmem:[%s3] sm:$0x1]
        %vm642 = vcmask 261120
        %v643 = vsel %vm642, %v639, 0.0
        %644 = vadd.xlane.f32.xlu0 %v643
        %v645 = vpop.xlane.xlu0 %644
        %v646 = vrcp.pop 32.0
        %v647 = vmul.f32 32.0, %v646
        %v648 = vsub.f32 1.0, %v647
        %v649 = vmul.f32 %v646, %v648
        %v650 = vadd.f32 %v646, %v649
        %vm651 = vweird.f32 %v646
        %v652 = vsel %vm651, %v646, %v650
        %v653 = vmul.f32 %v645, %v652
        %v654 = vsub.f32 %v639, %v653
        %v655 = vmul.f32 %v654, %v654
        %v656 = vsel %vm642, %v655, 0.0
        %657 = vadd.xlane.f32.xlu0 %v656
        %v658 = vpop.xlane.xlu0 %657
        %v659 = vmul.f32 %v658, %v652
        %v660 = vadd.f32 %v659, 1e-05
        %v661 = vrsqrt.pop %v660
        %v662 = vmul.f32 %v661, %v660
        %v663 = vmul.f32 %v662, %v661
        %v664 = vmul.f32 0.5, %v663
        %v665 = vsub.f32 1.5, %v664
        %v666 = vmul.f32 %v661, %v665
        %vm667 = vweird.f32 %v660
        %vm668 = vweird.f32 %v661
        %vm669 = vmor %vm667, %vm668
        %v670 = vsel %vm669, %v661, %v666
        %v671 = vmul.f32 %v654, %v670
        %v673 = vperm.slane %v640, 0
        %v675 = vmul.f32 %v671, %v673
        %v677 = vperm.slane %v641, 0
        %v679 = vadd.f32 %v675, %v677
        %v680 = vld [vmem:[%s637] sm:$0x1]
        %v681 = vpack.c.bf16 %v679, %v679
        %v682 = vld [vmem:[%s4] sm:$0xf]
        %v683 = vld [vmem:[%s4 + $0x4] sm:$0xf]
        %v684 = vld [vmem:[%s4 + $0x8] sm:$0xf]
        %v685 = vld [vmem:[%s4 + $0xc] sm:$0xf]
        %v686 = vld [vmem:[%s5] sm:$0x1]
        %v688 = vperm.slane %v686, 0
        %v694 = vunpack.c.l.b16 %v682
        %v695 = vunpack.c.l.b16 %v683
        %v696 = vunpack.c.l.b16 %v684
        %v697 = vunpack.c.l.b16 %v685
        %v698 = vpack.c.b16 %v695, %v694
        %v699 = vpack.c.b16 %v697, %v696
        %v703 = vsel %vm642, %v681, 0
        %705 = vmatpush.bf16.msra.mxu0 0
        %706 = vmatpush.bf16.msra.mxu0 0
        %707 = vmatpush.bf16.msra.mxu0 0
        %708 = vmatpush.bf16.msra.mxu0 0
        %709 = vmatpush.bf16.msra.mxu0 0
        %710 = vmatpush.bf16.msra.mxu0 0
        %711 = vmatpush.bf16.msra.mxu0 %v699
        %712 = vmatpush.bf16.msra.mxu0 %v698
        %713 = vmatmul.bf16.gmra.mxu0 %v703
        %v714 = vpop.f32.mrf.mxu0
        %v715 = vadd.f32 %v688, %v714
        %v716 = vpop.f32.mrf.mxu0
        %717 = vdwg.mxu0
        %v718 = vpack.c.bf16 %v715, %v715
        %720 = vrot.lane.b32.xlu0 %v718, 96
        %v721 = vpop.permute.xlu0 %720
        %vm722 = vcmask 64512
        %v724 = vsel %vm722, %v718, 0
        %v727 = vsel %vm722, %v721, 0
        %729 = vmatpush.bf16.xpose.msra.mxu0 0
        %730 = vmatpush.bf16.xpose.msra.mxu0 0
        %731 = vmatpush.bf16.xpose.msra.mxu0 0
        %732 = vmatpush.bf16.xpose.msra.mxu0 0
        %733 = vmatpush.bf16.xpose.msra.mxu0 0
        %734 = vmatpush.bf16.xpose.msra.mxu0 0
        %735 = vmatpush.bf16.xpose.msra.mxu0 0
        %736 = vmatpush.bf16.xpose.msra.mxu0 %v727
        %737 = vmatmul.bf16.gmra.mxu0 %v724
        %v738 = vpop.f32.mrf.mxu0
        %v739 = vadd.f32 0.0, %v738
        %v740 = vpop.f32.mrf.mxu0
        %741 = vdwg.mxu0
        %v742 = vmul.f32 %v739, 0.35355338
        %v744 = vperm.slane %v680, 0
        %v746 = vadd.f32 %v742, %v744
        %v747 = vsel %vm722, %v746, -inf
        %748 = vmax.xlane.f32.xlu0 %v747
        %v749 = vpop.xlane.xlu0 %748
        %v750 = vsub.f32 %v746, %v749
        %v751 = vmul.f32 %v750, 1.442695
        %v752 = vpow.pop %v751
        %v753 = vsel %vm722, %v752, 0.0
        %754 = vadd.xlane.f32.xlu0 %v753
        %v755 = vpop.xlane.xlu0 %754
        %v756 = vrcp.pop %v755
        %v757 = vmul.f32 %v752, %v756
        %v758 = vpack.c.bf16 %v757, %v757
        %759 = vrot.lane.b32.xlu0 %v718, 64
        %v760 = vpop.permute.xlu0 %759
        %v762 = vsel %vm722, %v758, 0
        %vm764 = vcmask 1043456
        %v766 = vsel %vm764, %v760, 0
        %768 = vmatpush.bf16.msra.mxu0 0
        %769 = vmatpush.bf16.msra.mxu0 0
        %770 = vmatpush.bf16.msra.mxu0 0
        %771 = vmatpush.bf16.msra.mxu0 0
        %772 = vmatpush.bf16.msra.mxu0 0
        %773 = vmatpush.bf16.msra.mxu0 0
        %774 = vmatpush.bf16.msra.mxu0 0
        %775 = vmatpush.bf16.msra.mxu0 %v766
        %776 = vmatmul.bf16.gmra.mxu0 %v762
        %v777 = vpop.f32.mrf.mxu0
        %v778 = vadd.f32 0.0, %v777
        %v779 = vpop.f32.mrf.mxu0
        %780 = vdwg.mxu0
        %781 = vst.msk [vmem:[#allocation2] sm:$0xff] %vm722, %v778
        %782 = vrot.lane.b32.xlu0 %v718, 120
        %v783 = vpop.permute.xlu0 %782
        %784 = vrot.lane.b32.xlu0 %v718, 88
        %v785 = vpop.permute.xlu0 %784
        %v787 = vsel %vm722, %v783, 0
        %v790 = vsel %vm722, %v785, 0
        %792 = vmatpush.bf16.xpose.msra.mxu0 0
        %793 = vmatpush.bf16.xpose.msra.mxu0 0
        %794 = vmatpush.bf16.xpose.msra.mxu0 0
        %795 = vmatpush.bf16.xpose.msra.mxu0 0
        %796 = vmatpush.bf16.xpose.msra.mxu0 0
        %797 = vmatpush.bf16.xpose.msra.mxu0 0
        %798 = vmatpush.bf16.xpose.msra.mxu0 0
        %799 = vmatpush.bf16.xpose.msra.mxu0 %v790
        %800 = vmatmul.bf16.gmra.mxu0 %v787
        %v801 = vpop.f32.mrf.mxu0
        %v802 = vadd.f32 0.0, %v801
        %v803 = vpop.f32.mrf.mxu0
        %804 = vdwg.mxu0
        %v805 = vmul.f32 %v802, 0.35355338
        %v806 = vadd.f32 %v805, %v744
        %v807 = vsel %vm722, %v806, -inf
        %808 = vmax.xlane.f32.xlu0 %v807
        %v809 = vpop.xlane.xlu0 %808
        %v810 = vsub.f32 %v806, %v809
        %v811 = vmul.f32 %v810, 1.442695
        %v812 = vpow.pop %v811
        %v813 = vsel %vm722, %v812, 0.0
        %814 = vadd.xlane.f32.xlu0 %v813
        %v815 = vpop.xlane.xlu0 %814
        %v816 = vrcp.pop %v815
        %v817 = vmul.f32 %v812, %v816
        %v818 = vpack.c.bf16 %v817, %v817
        %819 = vrot.lane.b32.xlu0 %v718, 56
        %v820 = vpop.permute.xlu0 %819
        %v822 = vsel %vm722, %v818, 0
        %v825 = vsel %vm764, %v820, 0
        %827 = vmatpush.bf16.msra.mxu0 0
        %828 = vmatpush.bf16.msra.mxu0 0
        %829 = vmatpush.bf16.msra.mxu0 0
        %830 = vmatpush.bf16.msra.mxu0 0
        %831 = vmatpush.bf16.msra.mxu0 0
        %832 = vmatpush.bf16.msra.mxu0 0
        %833 = vmatpush.bf16.msra.mxu0 0
        %834 = vmatpush.bf16.msra.mxu0 %v825
        %835 = vmatmul.bf16.gmra.mxu0 %v822
        %v836 = vpop.f32.mrf.mxu0
        %v837 = vadd.f32 0.0, %v836
        %v838 = vpop.f32.mrf.mxu0
        %839 = vdwg.mxu0
        %841 = vrot.lane.b32.xlu0 %v837, 8
        %v842 = vpop.permute.xlu0 %841
        %vm844 = vcmask 130112
        %845 = vst.msk [vmem:[#allocation2] sm:$0xff] %vm844, %v842
        %846 = vrot.lane.b32.xlu0 %v718, 112
        %v847 = vpop.permute.xlu0 %846
        %848 = vrot.lane.b32.xlu0 %v718, 80
        %v849 = vpop.permute.xlu0 %848
        %v851 = vsel %vm722, %v847, 0
        %v854 = vsel %vm722, %v849, 0
        %856 = vmatpush.bf16.xpose.msra.mxu0 0
        %857 = vmatpush.bf16.xpose.msra.mxu0 0
        %858 = vmatpush.bf16.xpose.msra.mxu0 0
        %859 = vmatpush.bf16.xpose.msra.mxu0 0
        %860 = vmatpush.bf16.xpose.msra.mxu0 0
        %861 = vmatpush.bf16.xpose.msra.mxu0 0
        %862 = vmatpush.bf16.xpose.msra.mxu0 0
        %863 = vmatpush.bf16.xpose.msra.mxu0 %v854
        %864 = vmatmul.bf16.gmra.mxu0 %v851
        %v865 = vpop.f32.mrf.mxu0
        %v866 = vadd.f32 0.0, %v865
        %v867 = vpop.f32.mrf.mxu0
        %868 = vdwg.mxu0
        %v869 = vmul.f32 %v866, 0.35355338
        %v870 = vadd.f32 %v869, %v744
        %v871 = vsel %vm722, %v870, -inf
        %872 = vmax.xlane.f32.xlu0 %v871
        %v873 = vpop.xlane.xlu0 %872
        %v874 = vsub.f32 %v870, %v873
        %v875 = vmul.f32 %v874, 1.442695
        %v876 = vpow.pop %v875
        %v877 = vsel %vm722, %v876, 0.0
        %878 = vadd.xlane.f32.xlu0 %v877
        %v879 = vpop.xlane.xlu0 %878
        %v880 = vrcp.pop %v879
        %v881 = vmul.f32 %v876, %v880
        %v882 = vpack.c.bf16 %v881, %v881
        %883 = vrot.lane.b32.xlu0 %v718, 48
        %v884 = vpop.permute.xlu0 %883
        %v886 = vsel %vm722, %v882, 0
        %v889 = vsel %vm764, %v884, 0
        %891 = vmatpush.bf16.msra.mxu0 0
        %892 = vmatpush.bf16.msra.mxu0 0
        %893 = vmatpush.bf16.msra.mxu0 0
        %894 = vmatpush.bf16.msra.mxu0 0
        %895 = vmatpush.bf16.msra.mxu0 0
        %896 = vmatpush.bf16.msra.mxu0 0
        %897 = vmatpush.bf16.msra.mxu0 0
        %898 = vmatpush.bf16.msra.mxu0 %v889
        %899 = vmatmul.bf16.gmra.mxu0 %v886
        %v900 = vpop.f32.mrf.mxu0
        %v901 = vadd.f32 0.0, %v900
        %v902 = vpop.f32.mrf.mxu0
        %903 = vdwg.mxu0
        %905 = vrot.lane.b32.xlu0 %v901, 16
        %v906 = vpop.permute.xlu0 %905
        %vm908 = vcmask 195712
        %909 = vst.msk [vmem:[#allocation2] sm:$0xff] %vm908, %v906
        %910 = vrot.lane.b32.xlu0 %v718, 104
        %v911 = vpop.permute.xlu0 %910
        %912 = vrot.lane.b32.xlu0 %v718, 72
        %v913 = vpop.permute.xlu0 %912
        %v915 = vsel %vm722, %v911, 0
        %v918 = vsel %vm722, %v913, 0
        %920 = vmatpush.bf16.xpose.msra.mxu0 0
        %921 = vmatpush.bf16.xpose.msra.mxu0 0
        %922 = vmatpush.bf16.xpose.msra.mxu0 0
        %923 = vmatpush.bf16.xpose.msra.mxu0 0
        %924 = vmatpush.bf16.xpose.msra.mxu0 0
        %925 = vmatpush.bf16.xpose.msra.mxu0 0
        %926 = vmatpush.bf16.xpose.msra.mxu0 0
        %927 = vmatpush.bf16.xpose.msra.mxu0 %v918
        %928 = vmatmul.bf16.gmra.mxu0 %v915
        %v929 = vpop.f32.mrf.mxu0
        %v930 = vadd.f32 0.0, %v929
        %v931 = vpop.f32.mrf.mxu0
        %932 = vdwg.mxu0
        %v933 = vmul.f32 %v930, 0.35355338
        %v934 = vadd.f32 %v933, %v744
        %v935 = vsel %vm722, %v934, -inf
        %936 = vmax.xlane.f32.xlu0 %v935
        %v937 = vpop.xlane.xlu0 %936
        %v938 = vsub.f32 %v934, %v937
        %v939 = vmul.f32 %v938, 1.442695
        %v940 = vpow.pop %v939
        %v941 = vsel %vm722, %v940, 0.0
        %942 = vadd.xlane.f32.xlu0 %v941
        %v943 = vpop.xlane.xlu0 %942
        %v944 = vrcp.pop %v943
        %v945 = vmul.f32 %v940, %v944
        %v946 = vpack.c.bf16 %v945, %v945
        %947 = vrot.lane.b32.xlu0 %v718, 40
        %v948 = vpop.permute.xlu0 %947
        %v950 = vsel %vm722, %v946, 0
        %v953 = vsel %vm764, %v948, 0
        %955 = vmatpush.bf16.msra.mxu0 0
        %956 = vmatpush.bf16.msra.mxu0 0
        %957 = vmatpush.bf16.msra.mxu0 0
        %958 = vmatpush.bf16.msra.mxu0 0
        %959 = vmatpush.bf16.msra.mxu0 0
        %960 = vmatpush.bf16.msra.mxu0 0
        %961 = vmatpush.bf16.msra.mxu0 0
        %962 = vmatpush.bf16.msra.mxu0 %v953
        %963 = vmatmul.bf16.gmra.mxu0 %v950
        %v964 = vpop.f32.mrf.mxu0
        %v965 = vadd.f32 0.0, %v964
        %v966 = vpop.f32.mrf.mxu0
        %967 = vdwg.mxu0
        %969 = vrot.lane.b32.xlu0 %v965, 24
        %v970 = vpop.permute.xlu0 %969
        %vm972 = vcmask 261312
        %973 = vst.msk [vmem:[#allocation2] sm:$0xff] %vm972, %v970
        %v974 = vld [vmem:[#allocation2] sm:$0xff]
        %v975 = vpack.c.bf16 %v974, %v974
        %v976 = vld [vmem:[%s6] sm:$0xf]
        %v977 = vld [vmem:[%s6 + $0x4] sm:$0xf]
        %v978 = vld [vmem:[%s6 + $0x8] sm:$0xf]
        %v979 = vld [vmem:[%s6 + $0xc] sm:$0xf]
        %v980 = vld [vmem:[%s7] sm:$0x1]
        %v982 = vperm.slane %v980, 0
        %v988 = vunpack.c.l.b16 %v976
        %v989 = vunpack.c.l.b16 %v977
        %v990 = vunpack.c.l.b16 %v978
        %v991 = vunpack.c.l.b16 %v979
        %v992 = vpack.c.b16 %v989, %v988
        %v993 = vpack.c.b16 %v991, %v990
        %v997 = vsel %vm642, %v975, 0
        %999 = vmatpush.bf16.msra.mxu0 0
        %1000 = vmatpush.bf16.msra.mxu0 0
        %1001 = vmatpush.bf16.msra.mxu0 0
        %1002 = vmatpush.bf16.msra.mxu0 0
        %1003 = vmatpush.bf16.msra.mxu0 0
        %1004 = vmatpush.bf16.msra.mxu0 0
        %1005 = vmatpush.bf16.msra.mxu0 %v993
        %1006 = vmatpush.bf16.msra.mxu0 %v992
        %1007 = vmatmul.bf16.gmra.mxu0 %v997
        %v1008 = vpop.f32.mrf.mxu0
        %v1009 = vadd.f32 %v982, %v1008
        %v1010 = vpop.f32.mrf.mxu0
        %1011 = vdwg.mxu0
        %v1012 = vadd.f32 %v1009, %v679
        %v1013 = vld [vmem:[%s8] sm:$0x1]
        %v1014 = vld [vmem:[%s9] sm:$0x1]
        %v1015 = vsel %vm642, %v1012, 0.0
        %1016 = vadd.xlane.f32.xlu0 %v1015
        %v1017 = vpop.xlane.xlu0 %1016
        %v1018 = vmul.f32 %v1017, %v652
        %v1019 = vsub.f32 %v1012, %v1018
        %v1020 = vmul.f32 %v1019, %v1019
        %v1021 = vsel %vm642, %v1020, 0.0
        %1022 = vadd.xlane.f32.xlu0 %v1021
        %v1023 = vpop.xlane.xlu0 %1022
        %v1024 = vmul.f32 %v1023, %v652
        %v1025 = vadd.f32 %v1024, 1e-05
        %v1026 = vrsqrt.pop %v1025
        %v1027 = vmul.f32 %v1026, %v1025
        %v1028 = vmul.f32 %v1027, %v1026
        %v1029 = vmul.f32 0.5, %v1028
        %v1030 = vsub.f32 1.5, %v1029
        %v1031 = vmul.f32 %v1026, %v1030
        %vm1032 = vweird.f32 %v1025
        %vm1033 = vweird.f32 %v1026
        %vm1034 = vmor %vm1032, %vm1033
        %v1035 = vsel %vm1034, %v1026, %v1031
        %v1036 = vmul.f32 %v1019, %v1035
        %v1038 = vperm.slane %v1013, 0
        %v1040 = vmul.f32 %v1036, %v1038
        %v1042 = vperm.slane %v1014, 0
        %v1044 = vadd.f32 %v1040, %v1042
        %v1045 = vpack.c.bf16 %v1044, %v1044
        %v1046 = vld [vmem:[%s10] sm:$0xf]
        %v1047 = vld [vmem:[%s10 + $0x4] sm:$0xf]
        %v1048 = vld [vmem:[%s10 + $0x8] sm:$0xf]
        %v1049 = vld [vmem:[%s10 + $0xc] sm:$0xf]
        %v1050 = vld [vmem:[%s11] sm:$0x1]
        %v1052 = vperm.slane %v1050, 0
        %v1058 = vunpack.c.l.b16 %v1046
        %v1059 = vunpack.c.l.b16 %v1047
        %v1060 = vunpack.c.l.b16 %v1048
        %v1061 = vunpack.c.l.b16 %v1049
        %v1062 = vpack.c.b16 %v1059, %v1058
        %v1063 = vpack.c.b16 %v1061, %v1060
        %v1067 = vsel %vm642, %v1045, 0
        %1069 = vmatpush.bf16.msra.mxu0 0
        %1070 = vmatpush.bf16.msra.mxu0 0
        %1071 = vmatpush.bf16.msra.mxu0 0
        %1072 = vmatpush.bf16.msra.mxu0 0
        %1073 = vmatpush.bf16.msra.mxu0 0
        %1074 = vmatpush.bf16.msra.mxu0 0
        %1075 = vmatpush.bf16.msra.mxu0 %v1063
        %1076 = vmatpush.bf16.msra.mxu0 %v1062
        %1077 = vmatmul.bf16.gmra.mxu0 %v1067
        %v1078 = vpop.f32.mrf.mxu0
        %v1079 = vadd.f32 %v1052, %v1078
        %v1080 = vpop.f32.mrf.mxu0
        %1081 = vdwg.mxu0
        %v1082 = vmul.f32 %v1079, 0.5
        %v1083 = vmul.f32 %v1079, 0.70710677
        %v1084 = vmul.f32 %v1083, %v1083
        %v1085 = vmin.f32 16.0, %v1084
        %v1086 = vmul.f32 %v1085, 2.1237322e-06
        %v1087 = vadd.f32 %v1086, 0.00028619796
        %v1088 = vmul.f32 %v1085, %v1087
        %v1089 = vadd.f32 %v1088, 0.0036580483
        %v1090 = vmul.f32 %v1085, %v1089
        %v1091 = vadd.f32 %v1090, 0.05243302
        %v1092 = vmul.f32 %v1085, %v1091
        %v1093 = vadd.f32 %v1092, 0.18741608
        %v1094 = vmul.f32 %v1085, %v1093
        %v1095 = vadd.f32 %v1094, 1.1283791
        %v1096 = vmul.f32 %v1083, %v1095
        %v1097 = vmul.f32 %v1085, 3.8918573e-05
        %v1098 = vadd.f32 %v1097, 0.001143296
        %v1099 = vmul.f32 %v1085, %v1098
        %v1100 = vadd.f32 %v1099, 0.014752088
        %v1101 = vmul.f32 %v1085, %v1100
        %v1102 = vadd.f32 %v1101, 0.112945676
        %v1103 = vmul.f32 %v1085, %v1102
        %v1104 = vadd.f32 %v1103, 0.4994258
        %v1105 = vmul.f32 %v1085, %v1104
        %v1106 = vadd.f32 %v1105, 1.0
        %v1107 = vrcp.pop %v1106
        %v1108 = vmul.f32 %v1106, %v1107
        %v1109 = vsub.f32 1.0, %v1108
        %v1110 = vmul.f32 %v1107, %v1109
        %v1111 = vadd.f32 %v1107, %v1110
        %vm1112 = vweird.f32 %v1106
        %vm1113 = vweird.f32 %v1107
        %vm1114 = vmor %vm1112, %vm1113
        %v1115 = vsel %vm1114, %v1107, %v1111
        %v1116 = vand.u32 2147483647, %v1106
        %vm1117 = vcmp.eq.f32.partialorder %v1116, 8.507059e+37
        %v1118 = vand.u32 %v1106, 2147483648
        %v1119 = vor.u32 1.1754944e-38, %v1118
        %v1120 = vsel %vm1117, %v1119, %v1115
        %v1121 = vmul.f32 %v1096, %v1120
        %v1122 = vmin.f32 %v1121, 1.0
        %v1123 = vmax.f32 %v1122, -1.0
        %v1124 = vadd.f32 %v1123, 1.0
        %v1125 = vmul.f32 %v1082, %v1124
        %v1126 = vpack.c.bf16 %v1125, %v1125
        %v1127 = vld [vmem:[%s12] sm:$0xf]
        %v1128 = vld [vmem:[%s12 + $0x4] sm:$0xf]
        %v1129 = vld [vmem:[%s12 + $0x8] sm:$0xf]
        %v1130 = vld [vmem:[%s12 + $0xc] sm:$0xf]
        %v1131 = vld [vmem:[%s12 + $0x10] sm:$0xf]
        %v1132 = vld [vmem:[%s12 + $0x14] sm:$0xf]
        %v1133 = vld [vmem:[%s12 + $0x18] sm:$0xf]
        %v1134 = vld [vmem:[%s12 + $0x1c] sm:$0xf]
        %v1135 = vld [vmem:[%s13] sm:$0x1]
        %v1137 = vperm.slane %v1135, 0
        %v1147 = vunpack.c.l.b16 %v1127
        %v1148 = vunpack.c.l.b16 %v1128
        %v1149 = vunpack.c.l.b16 %v1129
        %v1150 = vunpack.c.l.b16 %v1130
        %v1151 = vunpack.c.l.b16 %v1131
        %v1152 = vunpack.c.l.b16 %v1132
        %v1153 = vunpack.c.l.b16 %v1133
        %v1154 = vunpack.c.l.b16 %v1134
        %v1155 = vpack.c.b16 %v1148, %v1147
        %v1156 = vpack.c.b16 %v1150, %v1149
        %v1157 = vpack.c.b16 %v1152, %v1151
        %v1158 = vpack.c.b16 %v1154, %v1153
        %vm1163 = vcmask 523264
        %v1165 = vsel %vm1163, %v1126, 0
        %1167 = vmatpush.bf16.msra.mxu0 0
        %1168 = vmatpush.bf16.msra.mxu0 0
        %1169 = vmatpush.bf16.msra.mxu0 0
        %1170 = vmatpush.bf16.msra.mxu0 0
        %1171 = vmatpush.bf16.msra.mxu0 %v1158
        %1172 = vmatpush.bf16.msra.mxu0 %v1157
        %1173 = vmatpush.bf16.msra.mxu0 %v1156
        %1174 = vmatpush.bf16.msra.mxu0 %v1155
        %1175 = vmatmul.bf16.gmra.mxu0 %v1165
        %v1176 = vpop.f32.mrf.mxu0
        %v1177 = vadd.f32 %v1137, %v1176
        %v1178 = vpop.f32.mrf.mxu0
        %1179 = vdwg.mxu0
        %v1180 = vadd.f32 %v1177, %v1044
        %v1181 = vld [vmem:[%s14] sm:$0x1]
        %v1182 = vld [vmem:[%s15] sm:$0x1]
        %v1183 = vsel %vm642, %v1180, 0.0
        %1184 = vadd.xlane.f32.xlu0 %v1183
        %v1185 = vpop.xlane.xlu0 %1184
        %v1186 = vmul.f32 %v1185, %v652
        %v1187 = vsub.f32 %v1180, %v1186
        %v1188 = vmul.f32 %v1187, %v1187
        %v1189 = vsel %vm642, %v1188, 0.0
        %1190 = vadd.xlane.f32.xlu0 %v1189
        %v1191 = vpop.xlane.xlu0 %1190
        %v1192 = vmul.f32 %v1191, %v652
        %v1193 = vadd.f32 %v1192, 1e-05
        %v1194 = vrsqrt.pop %v1193
        %v1195 = vmul.f32 %v1194, %v1193
        %v1196 = vmul.f32 %v1195, %v1194
        %v1197 = vmul.f32 0.5, %v1196
        %v1198 = vsub.f32 1.5, %v1197
        %v1199 = vmul.f32 %v1194, %v1198
        %vm1200 = vweird.f32 %v1193
        %vm1201 = vweird.f32 %v1194
        %vm1202 = vmor %vm1200, %vm1201
        %v1203 = vsel %vm1202, %v1194, %v1199
        %v1204 = vmul.f32 %v1187, %v1203
        %v1206 = vperm.slane %v1181, 0
        %v1208 = vmul.f32 %v1204, %v1206
        %v1210 = vperm.slane %v1182, 0
        %v1212 = vadd.f32 %v1208, %v1210
        %v1213 = vpack.c.bf16 %v1212, %v1212
        %s1214 = scalar_lea.vmem %s4, 16
        %v1215 = vld [vmem:[%s1214] sm:$0xf]
        %v1216 = vld [vmem:[%s1214 + $0x4] sm:$0xf]
        %v1217 = vld [vmem:[%s1214 + $0x8] sm:$0xf]
        %v1218 = vld [vmem:[%s1214 + $0xc] sm:$0xf]
        %s1219 = scalar_lea.vmem %s5, 1
        %v1220 = vld [vmem:[%s1219] sm:$0x1]
        %v1222 = vperm.slane %v1220, 0
        %v1228 = vunpack.c.l.b16 %v1215
        %v1229 = vunpack.c.l.b16 %v1216
        %v1230 = vunpack.c.l.b16 %v1217
        %v1231 = vunpack.c.l.b16 %v1218
        %v1232 = vpack.c.b16 %v1229, %v1228
        %v1233 = vpack.c.b16 %v1231, %v1230
        %v1237 = vsel %vm642, %v1213, 0
        %1239 = vmatpush.bf16.msra.mxu0 0
        %1240 = vmatpush.bf16.msra.mxu0 0
        %1241 = vmatpush.bf16.msra.mxu0 0
        %1242 = vmatpush.bf16.msra.mxu0 0
        %1243 = vmatpush.bf16.msra.mxu0 0
        %1244 = vmatpush.bf16.msra.mxu0 0
        %1245 = vmatpush.bf16.msra.mxu0 %v1233
        %1246 = vmatpush.bf16.msra.mxu0 %v1232
        %1247 = vmatmul.bf16.gmra.mxu0 %v1237
        %v1248 = vpop.f32.mrf.mxu0
        %v1249 = vadd.f32 %v1222, %v1248
        %v1250 = vpop.f32.mrf.mxu0
        %1251 = vdwg.mxu0
        %v1252 = vpack.c.bf16 %v1249, %v1249
        %1254 = vrot.lane.b32.xlu0 %v1252, 96
        %v1255 = vpop.permute.xlu0 %1254
        %v1257 = vsel %vm722, %v1252, 0
        %v1260 = vsel %vm722, %v1255, 0
        %1262 = vmatpush.bf16.xpose.msra.mxu0 0
        %1263 = vmatpush.bf16.xpose.msra.mxu0 0
        %1264 = vmatpush.bf16.xpose.msra.mxu0 0
        %1265 = vmatpush.bf16.xpose.msra.mxu0 0
        %1266 = vmatpush.bf16.xpose.msra.mxu0 0
        %1267 = vmatpush.bf16.xpose.msra.mxu0 0
        %1268 = vmatpush.bf16.xpose.msra.mxu0 0
        %1269 = vmatpush.bf16.xpose.msra.mxu0 %v1260
        %1270 = vmatmul.bf16.gmra.mxu0 %v1257
        %v1271 = vpop.f32.mrf.mxu0
        %v1272 = vadd.f32 0.0, %v1271
        %v1273 = vpop.f32.mrf.mxu0
        %1274 = vdwg.mxu0
        %v1275 = vmul.f32 %v1272, 0.35355338
        %v1276 = vadd.f32 %v1275, %v744
        %v1277 = vsel %vm722, %v1276, -inf
        %1278 = vmax.xlane.f32.xlu0 %v1277
        %v1279 = vpop.xlane.xlu0 %1278
        %v1280 = vsub.f32 %v1276, %v1279
        %v1281 = vmul.f32 %v1280, 1.442695
        %v1282 = vpow.pop %v1281
        %v1283 = vsel %vm722, %v1282, 0.0
        %1284 = vadd.xlane.f32.xlu0 %v1283
        %v1285 = vpop.xlane.xlu0 %1284
        %v1286 = vrcp.pop %v1285
        %v1287 = vmul.f32 %v1282, %v1286
        %v1288 = vpack.c.bf16 %v1287, %v1287
        %1289 = vrot.lane.b32.xlu0 %v1252, 64
        %v1290 = vpop.permute.xlu0 %1289
        %v1292 = vsel %vm722, %v1288, 0
        %v1295 = vsel %vm764, %v1290, 0
        %1297 = vmatpush.bf16.msra.mxu0 0
        %1298 = vmatpush.bf16.msra.mxu0 0
        %1299 = vmatpush.bf16.msra.mxu0 0
        %1300 = vmatpush.bf16.msra.mxu0 0
        %1301 = vmatpush.bf16.msra.mxu0 0
        %1302 = vmatpush.bf16.msra.mxu0 0
        %1303 = vmatpush.bf16.msra.mxu0 0
        %1304 = vmatpush.bf16.msra.mxu0 %v1295
        %1305 = vmatmul.bf16.gmra.mxu0 %v1292
        %v1306 = vpop.f32.mrf.mxu0
        %v1307 = vadd.f32 0.0, %v1306
        %v1308 = vpop.f32.mrf.mxu0
        %1309 = vdwg.mxu0
        %1310 = vst.msk [vmem:[#allocation2] sm:$0xff] %vm722, %v1307
        %1311 = vrot.lane.b32.xlu0 %v1252, 120
        %v1312 = vpop.permute.xlu0 %1311
        %1313 = vrot.lane.b32.xlu0 %v1252, 88
        %v1314 = vpop.permute.xlu0 %1313
        %v1316 = vsel %vm722, %v1312, 0
        %v1319 = vsel %vm722, %v1314, 0
        %1321 = vmatpush.bf16.xpose.msra.mxu0 0
        %1322 = vmatpush.bf16.xpose.msra.mxu0 0
        %1323 = vmatpush.bf16.xpose.msra.mxu0 0
        %1324 = vmatpush.bf16.xpose.msra.mxu0 0
        %1325 = vmatpush.bf16.xpose.msra.mxu0 0
        %1326 = vmatpush.bf16.xpose.msra.mxu0 0
        %1327 = vmatpush.bf16.xpose.msra.mxu0 0
        %1328 = vmatpush.bf16.xpose.msra.mxu0 %v1319
        %1329 = vmatmul.bf16.gmra.mxu0 %v1316
        %v1330 = vpop.f32.mrf.mxu0
        %v1331 = vadd.f32 0.0, %v1330
        %v1332 = vpop.f32.mrf.mxu0
        %1333 = vdwg.mxu0
        %v1334 = vmul.f32 %v1331, 0.35355338
        %v1335 = vadd.f32 %v1334, %v744
        %v1336 = vsel %vm722, %v1335, -inf
        %1337 = vmax.xlane.f32.xlu0 %v1336
        %v1338 = vpop.xlane.xlu0 %1337
        %v1339 = vsub.f32 %v1335, %v1338
        %v1340 = vmul.f32 %v1339, 1.442695
        %v1341 = vpow.pop %v1340
        %v1342 = vsel %vm722, %v1341, 0.0
        %1343 = vadd.xlane.f32.xlu0 %v1342
        %v1344 = vpop.xlane.xlu0 %1343
        %v1345 = vrcp.pop %v1344
        %v1346 = vmul.f32 %v1341, %v1345
        %v1347 = vpack.c.bf16 %v1346, %v1346
        %1348 = vrot.lane.b32.xlu0 %v1252, 56
        %v1349 = vpop.permute.xlu0 %1348
        %v1351 = vsel %vm722, %v1347, 0
        %v1354 = vsel %vm764, %v1349, 0
        %1356 = vmatpush.bf16.msra.mxu0 0
        %1357 = vmatpush.bf16.msra.mxu0 0
        %1358 = vmatpush.bf16.msra.mxu0 0
        %1359 = vmatpush.bf16.msra.mxu0 0
        %1360 = vmatpush.bf16.msra.mxu0 0
        %1361 = vmatpush.bf16.msra.mxu0 0
        %1362 = vmatpush.bf16.msra.mxu0 0
        %1363 = vmatpush.bf16.msra.mxu0 %v1354
        %1364 = vmatmul.bf16.gmra.mxu0 %v1351
        %v1365 = vpop.f32.mrf.mxu0
        %v1366 = vadd.f32 0.0, %v1365
        %v1367 = vpop.f32.mrf.mxu0
        %1368 = vdwg.mxu0
        %1370 = vrot.lane.b32.xlu0 %v1366, 8
        %v1371 = vpop.permute.xlu0 %1370
        %1373 = vst.msk [vmem:[#allocation2] sm:$0xff] %vm844, %v1371
        %1374 = vrot.lane.b32.xlu0 %v1252, 112
        %v1375 = vpop.permute.xlu0 %1374
        %1376 = vrot.lane.b32.xlu0 %v1252, 80
        %v1377 = vpop.permute.xlu0 %1376
        %v1379 = vsel %vm722, %v1375, 0
        %v1382 = vsel %vm722, %v1377, 0
        %1384 = vmatpush.bf16.xpose.msra.mxu0 0
        %1385 = vmatpush.bf16.xpose.msra.mxu0 0
        %1386 = vmatpush.bf16.xpose.msra.mxu0 0
        %1387 = vmatpush.bf16.xpose.msra.mxu0 0
        %1388 = vmatpush.bf16.xpose.msra.mxu0 0
        %1389 = vmatpush.bf16.xpose.msra.mxu0 0
        %1390 = vmatpush.bf16.xpose.msra.mxu0 0
        %1391 = vmatpush.bf16.xpose.msra.mxu0 %v1382
        %1392 = vmatmul.bf16.gmra.mxu0 %v1379
        %v1393 = vpop.f32.mrf.mxu0
        %v1394 = vadd.f32 0.0, %v1393
        %v1395 = vpop.f32.mrf.mxu0
        %1396 = vdwg.mxu0
        %v1397 = vmul.f32 %v1394, 0.35355338
        %v1398 = vadd.f32 %v1397, %v744
        %v1399 = vsel %vm722, %v1398, -inf
        %1400 = vmax.xlane.f32.xlu0 %v1399
        %v1401 = vpop.xlane.xlu0 %1400
        %v1402 = vsub.f32 %v1398, %v1401
        %v1403 = vmul.f32 %v1402, 1.442695
        %v1404 = vpow.pop %v1403
        %v1405 = vsel %vm722, %v1404, 0.0
        %1406 = vadd.xlane.f32.xlu0 %v1405
        %v1407 = vpop.xlane.xlu0 %1406
        %v1408 = vrcp.pop %v1407
        %v1409 = vmul.f32 %v1404, %v1408
        %v1410 = vpack.c.bf16 %v1409, %v1409
        %1411 = vrot.lane.b32.xlu0 %v1252, 48
        %v1412 = vpop.permute.xlu0 %1411
        %v1414 = vsel %vm722, %v1410, 0
        %v1417 = vsel %vm764, %v1412, 0
        %1419 = vmatpush.bf16.msra.mxu0 0
        %1420 = vmatpush.bf16.msra.mxu0 0
        %1421 = vmatpush.bf16.msra.mxu0 0
        %1422 = vmatpush.bf16.msra.mxu0 0
        %1423 = vmatpush.bf16.msra.mxu0 0
        %1424 = vmatpush.bf16.msra.mxu0 0
        %1425 = vmatpush.bf16.msra.mxu0 0
        %1426 = vmatpush.bf16.msra.mxu0 %v1417
        %1427 = vmatmul.bf16.gmra.mxu0 %v1414
        %v1428 = vpop.f32.mrf.mxu0
        %v1429 = vadd.f32 0.0, %v1428
        %v1430 = vpop.f32.mrf.mxu0
        %1431 = vdwg.mxu0
        %1433 = vrot.lane.b32.xlu0 %v1429, 16
        %v1434 = vpop.permute.xlu0 %1433
        %1436 = vst.msk [vmem:[#allocation2] sm:$0xff] %vm908, %v1434
        %1437 = vrot.lane.b32.xlu0 %v1252, 104
        %v1438 = vpop.permute.xlu0 %1437
        %1439 = vrot.lane.b32.xlu0 %v1252, 72
        %v1440 = vpop.permute.xlu0 %1439
        %v1442 = vsel %vm722, %v1438, 0
        %v1445 = vsel %vm722, %v1440, 0
        %1447 = vmatpush.bf16.xpose.msra.mxu0 0
        %1448 = vmatpush.bf16.xpose.msra.mxu0 0
        %1449 = vmatpush.bf16.xpose.msra.mxu0 0
        %1450 = vmatpush.bf16.xpose.msra.mxu0 0
        %1451 = vmatpush.bf16.xpose.msra.mxu0 0
        %1452 = vmatpush.bf16.xpose.msra.mxu0 0
        %1453 = vmatpush.bf16.xpose.msra.mxu0 0
        %1454 = vmatpush.bf16.xpose.msra.mxu0 %v1445
        %1455 = vmatmul.bf16.gmra.mxu0 %v1442
        %v1456 = vpop.f32.mrf.mxu0
        %v1457 = vadd.f32 0.0, %v1456
        %v1458 = vpop.f32.mrf.mxu0
        %1459 = vdwg.mxu0
        %v1460 = vmul.f32 %v1457, 0.35355338
        %v1461 = vadd.f32 %v1460, %v744
        %v1462 = vsel %vm722, %v1461, -inf
        %1463 = vmax.xlane.f32.xlu0 %v1462
        %v1464 = vpop.xlane.xlu0 %1463
        %v1465 = vsub.f32 %v1461, %v1464
        %v1466 = vmul.f32 %v1465, 1.442695
        %v1467 = vpow.pop %v1466
        %v1468 = vsel %vm722, %v1467, 0.0
        %1469 = vadd.xlane.f32.xlu0 %v1468
        %v1470 = vpop.xlane.xlu0 %1469
        %v1471 = vrcp.pop %v1470
        %v1472 = vmul.f32 %v1467, %v1471
        %v1473 = vpack.c.bf16 %v1472, %v1472
        %1474 = vrot.lane.b32.xlu0 %v1252, 40
        %v1475 = vpop.permute.xlu0 %1474
        %v1477 = vsel %vm722, %v1473, 0
        %v1480 = vsel %vm764, %v1475, 0
        %1482 = vmatpush.bf16.msra.mxu0 0
        %1483 = vmatpush.bf16.msra.mxu0 0
        %1484 = vmatpush.bf16.msra.mxu0 0
        %1485 = vmatpush.bf16.msra.mxu0 0
        %1486 = vmatpush.bf16.msra.mxu0 0
        %1487 = vmatpush.bf16.msra.mxu0 0
        %1488 = vmatpush.bf16.msra.mxu0 0
        %1489 = vmatpush.bf16.msra.mxu0 %v1480
        %1490 = vmatmul.bf16.gmra.mxu0 %v1477
        %v1491 = vpop.f32.mrf.mxu0
        %v1492 = vadd.f32 0.0, %v1491
        %v1493 = vpop.f32.mrf.mxu0
        %1494 = vdwg.mxu0
        %1496 = vrot.lane.b32.xlu0 %v1492, 24
        %v1497 = vpop.permute.xlu0 %1496
        %1499 = vst.msk [vmem:[#allocation2] sm:$0xff] %vm972, %v1497
        %v1500 = vld [vmem:[#allocation2] sm:$0xff]
        %v1501 = vpack.c.bf16 %v1500, %v1500
        %s1502 = scalar_lea.vmem %s6, 16
        %v1503 = vld [vmem:[%s1502] sm:$0xf]
        %v1504 = vld [vmem:[%s1502 + $0x4] sm:$0xf]
        %v1505 = vld [vmem:[%s1502 + $0x8] sm:$0xf]
        %v1506 = vld [vmem:[%s1502 + $0xc] sm:$0xf]
        %s1507 = scalar_lea.vmem %s7, 1
        %v1508 = vld [vmem:[%s1507] sm:$0x1]
        %v1510 = vperm.slane %v1508, 0
        %v1516 = vunpack.c.l.b16 %v1503
        %v1517 = vunpack.c.l.b16 %v1504
        %v1518 = vunpack.c.l.b16 %v1505
        %v1519 = vunpack.c.l.b16 %v1506
        %v1520 = vpack.c.b16 %v1517, %v1516
        %v1521 = vpack.c.b16 %v1519, %v1518
        %v1525 = vsel %vm642, %v1501, 0
        %1527 = vmatpush.bf16.msra.mxu0 0
        %1528 = vmatpush.bf16.msra.mxu0 0
        %1529 = vmatpush.bf16.msra.mxu0 0
        %1530 = vmatpush.bf16.msra.mxu0 0
        %1531 = vmatpush.bf16.msra.mxu0 0
        %1532 = vmatpush.bf16.msra.mxu0 0
        %1533 = vmatpush.bf16.msra.mxu0 %v1521
        %1534 = vmatpush.bf16.msra.mxu0 %v1520
        %1535 = vmatmul.bf16.gmra.mxu0 %v1525
        %v1536 = vpop.f32.mrf.mxu0
        %v1537 = vadd.f32 %v1510, %v1536
        %v1538 = vpop.f32.mrf.mxu0
        %1539 = vdwg.mxu0
        %v1540 = vadd.f32 %v1537, %v1212
        %s1541 = scalar_lea.vmem %s8, 1
        %v1542 = vld [vmem:[%s1541] sm:$0x1]
        %s1543 = scalar_lea.vmem %s9, 1
        %v1544 = vld [vmem:[%s1543] sm:$0x1]
        %v1545 = vsel %vm642, %v1540, 0.0
        %1546 = vadd.xlane.f32.xlu0 %v1545
        %v1547 = vpop.xlane.xlu0 %1546
        %v1548 = vmul.f32 %v1547, %v652
        %v1549 = vsub.f32 %v1540, %v1548
        %v1550 = vmul.f32 %v1549, %v1549
        %v1551 = vsel %vm642, %v1550, 0.0
        %1552 = vadd.xlane.f32.xlu0 %v1551
        %v1553 = vpop.xlane.xlu0 %1552
        %v1554 = vmul.f32 %v1553, %v652
        %v1555 = vadd.f32 %v1554, 1e-05
        %v1556 = vrsqrt.pop %v1555
        %v1557 = vmul.f32 %v1556, %v1555
        %v1558 = vmul.f32 %v1557, %v1556
        %v1559 = vmul.f32 0.5, %v1558
        %v1560 = vsub.f32 1.5, %v1559
        %v1561 = vmul.f32 %v1556, %v1560
        %vm1562 = vweird.f32 %v1555
        %vm1563 = vweird.f32 %v1556
        %vm1564 = vmor %vm1562, %vm1563
        %v1565 = vsel %vm1564, %v1556, %v1561
        %v1566 = vmul.f32 %v1549, %v1565
        %v1568 = vperm.slane %v1542, 0
        %v1570 = vmul.f32 %v1566, %v1568
        %v1572 = vperm.slane %v1544, 0
        %v1574 = vadd.f32 %v1570, %v1572
        %v1575 = vpack.c.bf16 %v1574, %v1574
        %s1576 = scalar_lea.vmem %s10, 16
        %v1577 = vld [vmem:[%s1576] sm:$0xf]
        %v1578 = vld [vmem:[%s1576 + $0x4] sm:$0xf]
        %v1579 = vld [vmem:[%s1576 + $0x8] sm:$0xf]
        %v1580 = vld [vmem:[%s1576 + $0xc] sm:$0xf]
        %s1581 = scalar_lea.vmem %s11, 1
        %v1582 = vld [vmem:[%s1581] sm:$0x1]
        %v1584 = vperm.slane %v1582, 0
        %v1590 = vunpack.c.l.b16 %v1577
        %v1591 = vunpack.c.l.b16 %v1578
        %v1592 = vunpack.c.l.b16 %v1579
        %v1593 = vunpack.c.l.b16 %v1580
        %v1594 = vpack.c.b16 %v1591, %v1590
        %v1595 = vpack.c.b16 %v1593, %v1592
        %v1599 = vsel %vm642, %v1575, 0
        %1601 = vmatpush.bf16.msra.mxu0 0
        %1602 = vmatpush.bf16.msra.mxu0 0
        %1603 = vmatpush.bf16.msra.mxu0 0
        %1604 = vmatpush.bf16.msra.mxu0 0
        %1605 = vmatpush.bf16.msra.mxu0 0
        %1606 = vmatpush.bf16.msra.mxu0 0
        %1607 = vmatpush.bf16.msra.mxu0 %v1595
        %1608 = vmatpush.bf16.msra.mxu0 %v1594
        %1609 = vmatmul.bf16.gmra.mxu0 %v1599
        %v1610 = vpop.f32.mrf.mxu0
        %v1611 = vadd.f32 %v1584, %v1610
        %v1612 = vpop.f32.mrf.mxu0
        %1613 = vdwg.mxu0
        %v1614 = vmul.f32 %v1611, 0.5
        %v1615 = vmul.f32 %v1611, 0.70710677
        %v1616 = vmul.f32 %v1615, %v1615
        %v1617 = vmin.f32 16.0, %v1616
        %v1618 = vmul.f32 %v1617, 2.1237322e-06
        %v1619 = vadd.f32 %v1618, 0.00028619796
        %v1620 = vmul.f32 %v1617, %v1619
        %v1621 = vadd.f32 %v1620, 0.0036580483
        %v1622 = vmul.f32 %v1617, %v1621
        %v1623 = vadd.f32 %v1622, 0.05243302
        %v1624 = vmul.f32 %v1617, %v1623
        %v1625 = vadd.f32 %v1624, 0.18741608
        %v1626 = vmul.f32 %v1617, %v1625
        %v1627 = vadd.f32 %v1626, 1.1283791
        %v1628 = vmul.f32 %v1615, %v1627
        %v1629 = vmul.f32 %v1617, 3.8918573e-05
        %v1630 = vadd.f32 %v1629, 0.001143296
        %v1631 = vmul.f32 %v1617, %v1630
        %v1632 = vadd.f32 %v1631, 0.014752088
        %v1633 = vmul.f32 %v1617, %v1632
        %v1634 = vadd.f32 %v1633, 0.112945676
        %v1635 = vmul.f32 %v1617, %v1634
        %v1636 = vadd.f32 %v1635, 0.4994258
        %v1637 = vmul.f32 %v1617, %v1636
        %v1638 = vadd.f32 %v1637, 1.0
        %v1639 = vrcp.pop %v1638
        %v1640 = vmul.f32 %v1638, %v1639
        %v1641 = vsub.f32 1.0, %v1640
        %v1642 = vmul.f32 %v1639, %v1641
        %v1643 = vadd.f32 %v1639, %v1642
        %vm1644 = vweird.f32 %v1638
        %vm1645 = vweird.f32 %v1639
        %vm1646 = vmor %vm1644, %vm1645
        %v1647 = vsel %vm1646, %v1639, %v1643
        %v1648 = vand.u32 2147483647, %v1638
        %vm1649 = vcmp.eq.f32.partialorder %v1648, 8.507059e+37
        %v1650 = vand.u32 %v1638, 2147483648
        %v1651 = vor.u32 1.1754944e-38, %v1650
        %v1652 = vsel %vm1649, %v1651, %v1647
        %v1653 = vmul.f32 %v1628, %v1652
        %v1654 = vmin.f32 %v1653, 1.0
        %v1655 = vmax.f32 %v1654, -1.0
        %v1656 = vadd.f32 %v1655, 1.0
        %v1657 = vmul.f32 %v1614, %v1656
        %v1658 = vpack.c.bf16 %v1657, %v1657
        %s1659 = scalar_lea.vmem %s12, 32
        %v1660 = vld [vmem:[%s1659] sm:$0xf]
        %v1661 = vld [vmem:[%s1659 + $0x4] sm:$0xf]
        %v1662 = vld [vmem:[%s1659 + $0x8] sm:$0xf]
        %v1663 = vld [vmem:[%s1659 + $0xc] sm:$0xf]
        %v1664 = vld [vmem:[%s1659 + $0x10] sm:$0xf]
        %v1665 = vld [vmem:[%s1659 + $0x14] sm:$0xf]
        %v1666 = vld [vmem:[%s1659 + $0x18] sm:$0xf]
        %v1667 = vld [vmem:[%s1659 + $0x1c] sm:$0xf]
        %s1668 = scalar_lea.vmem %s13, 1
        %v1669 = vld [vmem:[%s1668] sm:$0x1]
        %v1671 = vperm.slane %v1669, 0
        %v1681 = vunpack.c.l.b16 %v1660
        %v1682 = vunpack.c.l.b16 %v1661
        %v1683 = vunpack.c.l.b16 %v1662
        %v1684 = vunpack.c.l.b16 %v1663
        %v1685 = vunpack.c.l.b16 %v1664
        %v1686 = vunpack.c.l.b16 %v1665
        %v1687 = vunpack.c.l.b16 %v1666
        %v1688 = vunpack.c.l.b16 %v1667
        %v1689 = vpack.c.b16 %v1682, %v1681
        %v1690 = vpack.c.b16 %v1684, %v1683
        %v1691 = vpack.c.b16 %v1686, %v1685
        %v1692 = vpack.c.b16 %v1688, %v1687
        %v1698 = vsel %vm1163, %v1658, 0
        %1700 = vmatpush.bf16.msra.mxu0 0
        %1701 = vmatpush.bf16.msra.mxu0 0
        %1702 = vmatpush.bf16.msra.mxu0 0
        %1703 = vmatpush.bf16.msra.mxu0 0
        %1704 = vmatpush.bf16.msra.mxu0 %v1692
        %1705 = vmatpush.bf16.msra.mxu0 %v1691
        %1706 = vmatpush.bf16.msra.mxu0 %v1690
        %1707 = vmatpush.bf16.msra.mxu0 %v1689
        %1708 = vmatmul.bf16.gmra.mxu0 %v1698
        %v1709 = vpop.f32.mrf.mxu0
        %v1710 = vadd.f32 %v1671, %v1709
        %v1711 = vpop.f32.mrf.mxu0
        %1712 = vdwg.mxu0
        %v1713 = vadd.f32 %v1710, %v1574
        %s1714 = scalar_lea.vmem %s14, 1
        %v1715 = vld [vmem:[%s1714] sm:$0x1]
        %s1716 = scalar_lea.vmem %s15, 1
        %v1717 = vld [vmem:[%s1716] sm:$0x1]
        %v1718 = vsel %vm642, %v1713, 0.0
        %1719 = vadd.xlane.f32.xlu0 %v1718
        %v1720 = vpop.xlane.xlu0 %1719
        %v1721 = vmul.f32 %v1720, %v652
        %v1722 = vsub.f32 %v1713, %v1721
        %v1723 = vmul.f32 %v1722, %v1722
        %v1724 = vsel %vm642, %v1723, 0.0
        %1725 = vadd.xlane.f32.xlu0 %v1724
        %v1726 = vpop.xlane.xlu0 %1725
        %v1727 = vmul.f32 %v1726, %v652
        %v1728 = vadd.f32 %v1727, 1e-05
        %v1729 = vrsqrt.pop %v1728
        %v1730 = vmul.f32 %v1729, %v1728
        %v1731 = vmul.f32 %v1730, %v1729
        %v1732 = vmul.f32 0.5, %v1731
        %v1733 = vsub.f32 1.5, %v1732
        %v1734 = vmul.f32 %v1729, %v1733
        %vm1735 = vweird.f32 %v1728
        %vm1736 = vweird.f32 %v1729
        %vm1737 = vmor %vm1735, %vm1736
        %v1738 = vsel %vm1737, %v1729, %v1734
        %v1739 = vmul.f32 %v1722, %v1738
        %v1741 = vperm.slane %v1715, 0
        %v1743 = vmul.f32 %v1739, %v1741
        %v1745 = vperm.slane %v1717, 0
        %v1747 = vadd.f32 %v1743, %v1745
        %v1748 = vpack.c.bf16 %v1747, %v1747
        %v1749 = vld [vmem:[%s16] sm:$0xf]
        %v1750 = vld [vmem:[%s16 + $0x4] sm:$0xf]
        %v1751 = vld [vmem:[%s16 + $0x8] sm:$0xf]
        %v1752 = vld [vmem:[%s16 + $0xc] sm:$0xf]
        %v1753 = vld [vmem:[%s17] sm:$0x1]
        %v1758 = vunpack.c.l.b16 %v1749
        %v1759 = vunpack.c.l.b16 %v1750
        %v1760 = vunpack.c.l.b16 %v1751
        %v1761 = vunpack.c.l.b16 %v1752
        %v1762 = vpack.c.b16 %v1759, %v1758
        %v1763 = vpack.c.b16 %v1761, %v1760
        %v1767 = vsel %vm642, %v1748, 0
        %1769 = vmatpush.bf16.msra.mxu0 0
        %1770 = vmatpush.bf16.msra.mxu0 0
        %1771 = vmatpush.bf16.msra.mxu0 0
        %1772 = vmatpush.bf16.msra.mxu0 0
        %1773 = vmatpush.bf16.msra.mxu0 0
        %1774 = vmatpush.bf16.msra.mxu0 0
        %1775 = vmatpush.bf16.msra.mxu0 %v1763
        %1776 = vmatpush.bf16.msra.mxu0 %v1762
        %1777 = vmatmul.bf16.gmra.mxu0 %v1767
        %v1778 = vpop.f32.mrf.mxu0
        %v1779 = vadd.f32 %v1753, %v1778
        %v1780 = vpop.f32.mrf.mxu0
        %1781 = vdwg.mxu0
        %v1782 = vtanh.pop %v1779
        %v1783 = vpack.c.bf16 %v1782, %v1782
        %v1784 = vld [vmem:[%s18] sm:$0xf]
        %v1785 = vld [vmem:[%s18 + $0x4] sm:$0xf]
        %v1786 = vld [vmem:[%s18 + $0x8] sm:$0xf]
        %v1787 = vld [vmem:[%s18 + $0xc] sm:$0xf]
        %v1788 = vld [vmem:[%s19] sm:$0x1]
        %v1793 = vunpack.c.l.b16 %v1784
        %v1794 = vunpack.c.l.b16 %v1785
        %v1795 = vunpack.c.l.b16 %v1786
        %v1796 = vunpack.c.l.b16 %v1787
        %v1797 = vpack.c.b16 %v1794, %v1793
        %v1798 = vpack.c.b16 %v1796, %v1795
        %v1802 = vsel %vm642, %v1783, 0
        %1804 = vmatpush.bf16.msra.mxu0 0
        %1805 = vmatpush.bf16.msra.mxu0 0
        %1806 = vmatpush.bf16.msra.mxu0 0
        %1807 = vmatpush.bf16.msra.mxu0 0
        %1808 = vmatpush.bf16.msra.mxu0 0
        %1809 = vmatpush.bf16.msra.mxu0 0
        %1810 = vmatpush.bf16.msra.mxu0 %v1798
        %1811 = vmatpush.bf16.msra.mxu0 %v1797
        %1812 = vmatmul.bf16.gmra.mxu0 %v1802
        %v1813 = vpop.f32.mrf.mxu0
        %v1814 = vadd.f32 %v1788, %v1813
        %v1815 = vpop.f32.mrf.mxu0
        %1816 = vdwg.mxu0
        %vm1817 = vcmask 16384
        %1818 = vst.msk [vmem:[%s630] sm:$0x1] %vm1817, %v1814
        %s1819 = sand.u32 %s472, 1
        %s1820 = scalar_lea.sflag [#allocation4], %s1819
        %s1821 = sand.u32 %s472, 1
        %s1822 = scalar_lea.vmem [#allocation3], %s1821
        // Predicated region
        $region101: #{roberta_classifier_forward.1} parent=99 // pred_check
          %p1823 = pneg %p482
        $region102: #{roberta_classifier_forward.1} parent=99 // pred_check_branch
          %1825 = sbr.rel (%p1823) target = $region104
        $region103: #{roberta_classifier_forward.1} parent=99 // pred_region
          %1827 = vsyncadd %s1820, 0
          %s1828 = scalar_lea.hbm %s20, %s34
          %s1830 = sshll.u32 %s1822, 4
          %s1831 = int_to_ptr.vmem [resolvable:$true] %s1830
          %s1832 = sshll.u32 %s1828, 4
          %s1833 = int_to_ptr.hbm [resolvable:$true] %s1832
          %1835 = dma.vmem_to_hbm [thread:$0]  %s1831, 16, %s1833, %s1820
        $region104: #{roberta_classifier_forward.1} parent=99 // pred_fallthru
          _
      $region100: #{roberta_classifier_forward.1} parent=5 // pred_fallthru
        _
      %p1836 = scmp.le.s32.totalorder 2, %s29
      // Predicated region
      $region105: #{roberta_classifier_forward.1} parent=5 // pred_check
        %p1837 = pneg %p1836
      $region106: #{roberta_classifier_forward.1} parent=5 // pred_check_branch
        %1839 = sbr.rel (%p1837) target = $region108
      $region107: #{roberta_classifier_forward.1} parent=5 // pred_region
        %s1840 = ssub.s32 %s29, 2
        // Predicated region
        $region109: #{roberta_classifier_forward.1} parent=107 // pred_check
          %p1841 = pneg %p488
        $region110: #{roberta_classifier_forward.1} parent=107 // pred_check_branch
          %1843 = sbr.rel (%p1841) target = $region112
        $region111: #{roberta_classifier_forward.1} parent=107 // pred_region
          %s1844 = sand.u32 %s473, 1
          %s1845 = scalar_lea.sflag [#allocation4], %s1844
          %s1846 = sand.u32 %s473, 1
          %s1847 = scalar_lea.vmem [#allocation3], %s1846
          %1849 = dma.done %s1845, 16
        $region112: #{roberta_classifier_forward.1} parent=107 // pred_fallthru
          _
      $region108: #{roberta_classifier_forward.1} parent=5 // pred_fallthru
        _
    $region6: #{roberta_classifier_forward.1} parent=1 // loop_footer
      %s33 = sadd.s32 1, %s29
    $region7: #{roberta_classifier_forward.1} parent=1 // loop_footer_branch
      %28 = sbr.rel target = $region3
    $region8: #{roberta_classifier_forward.1} parent=1 // loop_exit
      _
    %1850 = vsyncpa [#allocation4], 1
    %s1851 = scalar_lea.sflag [#allocation4], 1
    %1852 = vsyncpa %s1851, 1

</llo_original>
